<compile_context>
chip_gen: v5e
topology: v5e:2x2
jax: 0.10.0
libtpu: 0.0.40
codegen_flags: <defaults>
</compile_context>

<pallas_src>
import functools
import math

import jax
import jax.numpy as jnp
from jax.experimental import pallas as pl
from jax.experimental.pallas import tpu as pltpu

VMEM_SPEC = pl.BlockSpec(memory_space=pltpu.MemorySpace.VMEM)


def _mm(a, b):
    """MXU matmul: bf16 operands, f32 accumulation."""
    return jnp.dot(a.astype(jnp.bfloat16), b.astype(jnp.bfloat16),
                   preferred_element_type=jnp.float32)


def _qkT(q, k):
    """(L, hd) x (S, hd) -> (L, S) == q @ k.T ; bf16 operands, f32 acc."""
    return jax.lax.dot_general(q.astype(jnp.bfloat16), k.astype(jnp.bfloat16),
                               (((1,), (1,)), ((), ())),
                               preferred_element_type=jnp.float32)


def _layer_norm(z, g, b, eps):
    mu = jnp.mean(z, axis=-1, keepdims=True)
    d = z - mu
    var = jnp.mean(d * d, axis=-1, keepdims=True)   # two-pass: no cancellation
    return d * jax.lax.rsqrt(var + eps) * g + b


def _decoder_layer_kernel(
        # ---- inputs: t-major (T*B, D) activations + weights (28 refs)
        x_ref, qpos_ref, mem_ref, pos_ref,
        sa_wqk_ref, sa_bqk_ref, sa_wv_ref, sa_bv_ref, sa_wo_ref, sa_bo_ref,
        ca_wq_ref, ca_bq_ref, ca_wk_ref, ca_bk_ref, ca_wv_ref, ca_bv_ref,
        ca_wo_ref, ca_bo_ref,
        n1g_ref, n1b_ref, n2g_ref, n2b_ref, n3g_ref, n3b_ref,
        w1_ref, b1_ref, w2_ref, b2_ref,
        # ---- outputs
        out_ref, attnw_ref,
        # ---- VMEM scratch
        sblk_s, sab_s, sat_s, qc_s, kc_s, vc_s, cblk_s, cctx_s,
        *, T, B, H, eps):
    D = x_ref.shape[1]
    hd = D // H
    scale = 1.0 / math.sqrt(hd)

    # ---------------- self-attention: attends over T within each batch b ---------
    # Batch b's rows live at t-major rows {b, b+B, b+2B, ...}: read them with a
    # strided slice (no permutation matmul).  B is small, so this loop is static.
    for b in range(B):
        rows_b = pl.ds(b, T, stride=B)
        x_b = x_ref[rows_b, :]                                    # (T, D)
        qp_b = qpos_ref[rows_b, :]
        qk = _mm(x_b + qp_b, sa_wqk_ref[...]) + sa_bqk_ref[...]   # (T, 2D) fused Q|K
        v = _mm(x_b, sa_wv_ref[...]) + sa_bv_ref[...]             # (T, D)
        for h in range(H):
            c0 = h * hd
            s = _qkT(qk[:, c0:c0 + hd], qk[:, D + c0:D + c0 + hd]) * scale
            m = jnp.max(s, axis=-1, keepdims=True)
            p = jnp.exp(s - m)                                    # f32
            inv = pl.reciprocal(jnp.sum(p, axis=-1, keepdims=True), approx=True)
            # weights are discarded here -> no normalized-probability tensor kept
            sblk_s[:, c0:c0 + hd] = _mm(p, v[:, c0:c0 + hd]) * inv
        # per-batch output projection, stored b-major
        sab_s[b * T:(b + 1) * T, :] = (_mm(sblk_s[...], sa_wo_ref[...])
                                       + sa_bo_ref[...])

    # regroup self-attn output b-major -> t-major via strided reads (static starts)
    # TODO(synk): convert to pl.loop for large T to bound unrolled code size.
    for t in range(T):
        sat_s[t * B:(t + 1) * B, :] = sab_s[pl.ds(t, B, stride=T), :]

    tgt1 = _layer_norm(x_ref[...] + sat_s[...], n1g_ref[...], n1b_ref[...], eps)

    # -------- cross-attention (batch_first=True quirk: attends over B per t) -----
    qc_s[...] = _mm(tgt1 + qpos_ref[...], ca_wq_ref[...]) + ca_bq_ref[...]
    kc_s[...] = _mm(mem_ref[...] + pos_ref[...], ca_wk_ref[...]) + ca_bk_ref[...]
    vc_s[...] = _mm(mem_ref[...], ca_wv_ref[...]) + ca_bv_ref[...]

    inv_heads = 1.0 / H

    def ca_body(t, carry):
        row0 = pl.multiple_of(t * B, B)
        rows = pl.ds(row0, B)
        q_blk = qc_s[rows, :]                                     # (B, D)
        k_blk = kc_s[rows, :]
        v_blk = vc_s[rows, :]
        w_acc = jnp.zeros((B, B), jnp.float32)
        for h in range(H):
            c0 = h * hd
            s = _qkT(q_blk[:, c0:c0 + hd], k_blk[:, c0:c0 + hd]) * scale
            m = jnp.max(s, axis=-1, keepdims=True)
            p = jnp.exp(s - m)
            # exact normalization: these probabilities are returned to the caller
            pn = p / jnp.sum(p, axis=-1, keepdims=True)
            cblk_s[:, c0:c0 + hd] = _mm(pn, v_blk[:, c0:c0 + hd])
            w_acc = w_acc + pn
        cctx_s[rows, :] = cblk_s[...]
        attnw_ref[rows, :] = w_acc * inv_heads                    # head-averaged
        return carry

    jax.lax.fori_loop(0, T, ca_body, 0)

    ca_out = _mm(cctx_s[...], ca_wo_ref[...]) + ca_bo_ref[...]
    tgt2 = _layer_norm(tgt1 + ca_out, n2g_ref[...], n2b_ref[...], eps)

    # ---------------- feed-forward ----------------
    hdn = jnp.maximum(_mm(tgt2, w1_ref[...]) + b1_ref[...], 0.0)
    ff = _mm(hdn, w2_ref[...]) + b2_ref[...]
    out = _layer_norm(tgt2 + ff, n3g_ref[...], n3b_ref[...], eps)
    out_ref[...] = out.astype(out_ref.dtype)


def transformer_decoder_layer(params, tgt, memory, pos=None, query_pos=None):
    """forward_post, eval mode (dropout = identity), masks = None."""
    T, B, D = tgt.shape
    M = memory.shape[0]
    if M != T:
        raise ValueError("batch_first=True cross-attn on seq-first tensors needs T == M")
    H = params["nhead"]
    F = params["w1"].shape[1]

    if query_pos is None:
        query_pos = jnp.zeros_like(tgt)
    if pos is None:
        pos = jnp.zeros_like(memory)

    rows = T * B
    x2 = tgt.reshape(rows, D)          # t-major flattening (free)
    qp2 = query_pos.reshape(rows, D)
    mem2 = memory.reshape(rows, D)
    pos2 = pos.reshape(rows, D)

    bf16 = lambda w: w.astype(jnp.bfloat16)   # MXU weights live in VMEM as bf16
    args = (
        x2, qp2, mem2, pos2,
        bf16(params["sa_wqk"]), params["sa_bqk"], bf16(params["sa_wv"]), params["sa_bv"],
        bf16(params["sa_wo"]), params["sa_bo"],
        bf16(params["ca_wq"]), params["ca_bq"], bf16(params["ca_wk"]), params["ca_bk"],
        bf16(params["ca_wv"]), params["ca_bv"], bf16(params["ca_wo"]), params["ca_bo"],
        params["n1_g"], params["n1_b"], params["n2_g"], params["n2_b"],
        params["n3_g"], params["n3_b"],
        bf16(params["w1"]), params["b1"], bf16(params["w2"]), params["b2"],
    )

    flops = int(2 * rows * D * (4 * D)              # self-attn projections
                + 2 * rows * D * (4 * D)            # cross-attn projections
                + 2 * 2 * rows * D * F              # FFN
                + 4 * B * T * T * D                 # self-attn score + context
                + 4 * T * B * B * D)                # cross-attn score + context
    transcendentals = int(B * H * T * T + T * H * B * B + 3 * rows)
    bytes_accessed = int(sum(a.size * a.dtype.itemsize for a in args)
                         + rows * D * 4 + rows * B * 4)

    kernel = functools.partial(_decoder_layer_kernel, T=T, B=B, H=H, eps=1e-5)
    out2, w2 = pl.pallas_call(
        kernel,
        out_shape=(jax.ShapeDtypeStruct((rows, D), tgt.dtype),
                   jax.ShapeDtypeStruct((rows, B), jnp.float32)),
        in_specs=[VMEM_SPEC] * len(args),
        out_specs=(VMEM_SPEC, VMEM_SPEC),
        scratch_shapes=[
            pltpu.VMEM((T, D), jnp.float32),      # sblk_s: per-batch self-attn ctx
            pltpu.VMEM((rows, D), jnp.float32),   # sab_s : self-attn out, b-major
            pltpu.VMEM((rows, D), jnp.float32),   # sat_s : self-attn out, t-major
            pltpu.VMEM((rows, D), jnp.float32),   # qc_s
            pltpu.VMEM((rows, D), jnp.float32),   # kc_s
            pltpu.VMEM((rows, D), jnp.float32),   # vc_s
            pltpu.VMEM((B, D), jnp.float32),      # cblk_s: per-t cross-attn ctx
            pltpu.VMEM((rows, D), jnp.float32),   # cctx_s: cross-attn ctx, t-major
        ],
        compiler_params=pltpu.CompilerParams(vmem_limit_bytes=64 * 1024 * 1024),
        cost_estimate=pl.CostEstimate(flops=flops, transcendentals=transcendentals,
                                      bytes_accessed=bytes_accessed),
    )(*args)

    return out2.reshape(T, B, D), w2.reshape(T, B, B)


def init_params(key, d_model, nhead, dim_ff):
    ks = jax.random.split(key, 9)
    s = 0.05

    def w(k, shape):
        return jax.random.normal(k, shape, jnp.float32) * s

    def zeros(n):
        return jnp.zeros((1, n), jnp.float32)

    def ones(n):
        return jnp.ones((1, n), jnp.float32)

    return {
        "nhead": nhead,
        # self-attention: fused Q|K projection, separate V, output proj
        "sa_wqk": w(ks[0], (d_model, 2 * d_model)), "sa_bqk": zeros(2 * d_model),
        "sa_wv": w(ks[1], (d_model, d_model)), "sa_bv": zeros(d_model),
        "sa_wo": w(ks[2], (d_model, d_model)), "sa_bo": zeros(d_model),
        # cross-attention
        "ca_wq": w(ks[3], (d_model, d_model)), "ca_bq": zeros(d_model),
        "ca_wk": w(ks[4], (d_model, d_model)), "ca_bk": zeros(d_model),
        "ca_wv": w(ks[5], (d_model, d_model)), "ca_bv": zeros(d_model),
        "ca_wo": w(ks[6], (d_model, d_model)), "ca_bo": zeros(d_model),
        # feed-forward
        "w1": w(ks[7], (d_model, dim_ff)), "b1": zeros(dim_ff),
        "w2": w(ks[8], (dim_ff, d_model)), "b2": zeros(d_model),
        # layer norms
        "n1_g": ones(d_model), "n1_b": zeros(d_model),
        "n2_g": ones(d_model), "n2_b": zeros(d_model),
        "n3_g": ones(d_model), "n3_b": zeros(d_model),
    }


if __name__ == "__main__":
    d_model, nhead, dim_ff = 32, 4, 64
    T = M = 8   # cross-attn (batch_first=True on seq-first tensors) requires T == M
    B = 2

    key = jax.random.PRNGKey(0)
    k1, k2, k3, k4, kp = jax.random.split(key, 5)
    tgt = jax.random.normal(k1, (T, B, d_model), jnp.float32)
    memory = jax.random.normal(k2, (M, B, d_model), jnp.float32)
    query_pos = jax.random.normal(k3, (T, B, d_model), jnp.float32)
    pos = jax.random.normal(k4, (M, B, d_model), jnp.float32)

    params = init_params(kp, d_model, nhead, dim_ff)

    fwd = jax.jit(lambda t_, m_, p_, qp_: transformer_decoder_layer(params, t_, m_, p_, qp_))
    out, attn_w = fwd(tgt, memory, pos, query_pos)
    jax.block_until_ready((out, attn_w))

    assert out.shape == (T, B, d_model)
    assert attn_w.shape == (T, B, B)
    assert bool(jnp.all(jnp.isfinite(out)))
    assert bool(jnp.all(jnp.isfinite(attn_w)))
    # returned cross-attention weights are exactly normalized -> rows sum to 1
    assert bool(jnp.allclose(jnp.sum(attn_w, axis=-1), 1.0, atol=1e-3))
    print("KERNEL_OK")
</pallas_src>

<mosaic_0001>
module attributes {stable_mosaic.version = 11 : i64} {
  func.func @_decoder_layer_kernel(%arg0: memref<16x32xf32, #tpu.memory_space<vmem>>, %arg1: memref<16x32xf32, #tpu.memory_space<vmem>>, %arg2: memref<16x32xf32, #tpu.memory_space<vmem>>, %arg3: memref<16x32xf32, #tpu.memory_space<vmem>>, %arg4: memref<32x64xbf16, #tpu.memory_space<vmem>>, %arg5: memref<1x64xf32, #tpu.memory_space<vmem>>, %arg6: memref<32x32xbf16, #tpu.memory_space<vmem>>, %arg7: memref<1x32xf32, #tpu.memory_space<vmem>>, %arg8: memref<32x32xbf16, #tpu.memory_space<vmem>>, %arg9: memref<1x32xf32, #tpu.memory_space<vmem>>, %arg10: memref<32x32xbf16, #tpu.memory_space<vmem>>, %arg11: memref<1x32xf32, #tpu.memory_space<vmem>>, %arg12: memref<32x32xbf16, #tpu.memory_space<vmem>>, %arg13: memref<1x32xf32, #tpu.memory_space<vmem>>, %arg14: memref<32x32xbf16, #tpu.memory_space<vmem>>, %arg15: memref<1x32xf32, #tpu.memory_space<vmem>>, %arg16: memref<32x32xbf16, #tpu.memory_space<vmem>>, %arg17: memref<1x32xf32, #tpu.memory_space<vmem>>, %arg18: memref<1x32xf32, #tpu.memory_space<vmem>>, %arg19: memref<1x32xf32, #tpu.memory_space<vmem>>, %arg20: memref<1x32xf32, #tpu.memory_space<vmem>>, %arg21: memref<1x32xf32, #tpu.memory_space<vmem>>, %arg22: memref<1x32xf32, #tpu.memory_space<vmem>>, %arg23: memref<1x32xf32, #tpu.memory_space<vmem>>, %arg24: memref<32x64xbf16, #tpu.memory_space<vmem>>, %arg25: memref<1x64xf32, #tpu.memory_space<vmem>>, %arg26: memref<64x32xbf16, #tpu.memory_space<vmem>>, %arg27: memref<1x32xf32, #tpu.memory_space<vmem>>, %arg28: memref<16x32xf32, #tpu.memory_space<vmem>>, %arg29: memref<16x2xf32, #tpu.memory_space<vmem>>, %arg30: memref<8x32xf32, #tpu.memory_space<vmem>>, %arg31: memref<16x32xf32, #tpu.memory_space<vmem>>, %arg32: memref<16x32xf32, #tpu.memory_space<vmem>>, %arg33: memref<16x32xf32, #tpu.memory_space<vmem>>, %arg34: memref<16x32xf32, #tpu.memory_space<vmem>>, %arg35: memref<16x32xf32, #tpu.memory_space<vmem>>, %arg36: memref<2x32xf32, #tpu.memory_space<vmem>>, %arg37: memref<16x32xf32, #tpu.memory_space<vmem>>) attributes {dimension_semantics = [], scalar_prefetch = 0 : i64, scratch_operands = 8 : i64, tpu.core_type = #tpu.core_type<tc>} {
    %c0 = arith.constant 0 : index
    %c0_0 = arith.constant 0 : index
    %0 = tpu.strided_load %arg0[%c0, %c0_0] {strides = array<i32: 2, 1>} : memref<16x32xf32, #tpu.memory_space<vmem>>, vector<8x32xf32>
    %c0_1 = arith.constant 0 : index
    %c0_2 = arith.constant 0 : index
    %1 = tpu.strided_load %arg1[%c0_1, %c0_2] {strides = array<i32: 2, 1>} : memref<16x32xf32, #tpu.memory_space<vmem>>, vector<8x32xf32>
    %2 = arith.addf %0, %1 : vector<8x32xf32>
    %c0_3 = arith.constant 0 : index
    %c0_4 = arith.constant 0 : index
    %3 = vector.load %arg4[%c0_3, %c0_4] : memref<32x64xbf16, #tpu.memory_space<vmem>>, vector<32x64xbf16>
    %4 = arith.truncf %2 : vector<8x32xf32> to vector<8x32xbf16>
    %cst = arith.constant dense<0.000000e+00> : vector<8x64xf32>
    %5 = tpu.matmul %4, %3, %cst {dimension_numbers = #tpu.dot_dimension_numbers<[1], [0], [0], [1], [0, 0, 1, 1], [], []>} : vector<8x32xbf16>, vector<32x64xbf16>, vector<8x64xf32> -> vector<8x64xf32>
    %c0_5 = arith.constant 0 : index
    %c0_6 = arith.constant 0 : index
    %6 = vector.load %arg5[%c0_5, %c0_6] : memref<1x64xf32, #tpu.memory_space<vmem>>, vector<1x64xf32>
    %7 = vector.broadcast %6 : vector<1x64xf32> to vector<8x64xf32>
    %8 = arith.addf %5, %7 : vector<8x64xf32>
    %c0_7 = arith.constant 0 : index
    %c0_8 = arith.constant 0 : index
    %9 = vector.load %arg6[%c0_7, %c0_8] : memref<32x32xbf16, #tpu.memory_space<vmem>>, vector<32x32xbf16>
    %10 = arith.truncf %0 : vector<8x32xf32> to vector<8x32xbf16>
    %cst_9 = arith.constant dense<0.000000e+00> : vector<8x32xf32>
    %11 = tpu.matmul %10, %9, %cst_9 {dimension_numbers = #tpu.dot_dimension_numbers<[1], [0], [0], [1], [0, 0, 1, 1], [], []>} : vector<8x32xbf16>, vector<32x32xbf16>, vector<8x32xf32> -> vector<8x32xf32>
    %c0_10 = arith.constant 0 : index
    %c0_11 = arith.constant 0 : index
    %12 = vector.load %arg7[%c0_10, %c0_11] : memref<1x32xf32, #tpu.memory_space<vmem>>, vector<1x32xf32>
    %13 = vector.broadcast %12 : vector<1x32xf32> to vector<8x32xf32>
    %14 = arith.addf %11, %13 : vector<8x32xf32>
    %15 = vector.extract_strided_slice %8 {offsets = [0, 0], sizes = [8, 8], strides = [1, 1]} : vector<8x64xf32> to vector<8x8xf32>
    %16 = vector.extract_strided_slice %8 {offsets = [0, 32], sizes = [8, 8], strides = [1, 1]} : vector<8x64xf32> to vector<8x8xf32>
    %17 = arith.truncf %15 : vector<8x8xf32> to vector<8x8xbf16>
    %18 = arith.truncf %16 : vector<8x8xf32> to vector<8x8xbf16>
    %cst_12 = arith.constant dense<0.000000e+00> : vector<8x8xf32>
    %19 = tpu.matmul %17, %18, %cst_12 {dimension_numbers = #tpu.dot_dimension_numbers<[1], [1], [0], [0], [0, 0, 1, 0], [], []>} : vector<8x8xbf16>, vector<8x8xbf16>, vector<8x8xf32> -> vector<8x8xf32>
    %cst_13 = arith.constant 0.353553385 : f32
    %20 = vector.broadcast %cst_13 : f32 to vector<8x8xf32>
    %21 = arith.mulf %19, %20 : vector<8x8xf32>
    %cst_14 = arith.constant dense<0xFF800000> : vector<8xf32>
    %22 = vector.multi_reduction <maximumf>, %21, %cst_14 [1] : vector<8x8xf32> to vector<8xf32>
    %23 = vector.shape_cast %22 : vector<8xf32> to vector<8x1xf32>
    %24 = vector.broadcast %23 : vector<8x1xf32> to vector<8x8xf32>
    %25 = arith.subf %21, %24 : vector<8x8xf32>
    %26 = math.exp %25 : vector<8x8xf32>
    %cst_15 = arith.constant dense<0.000000e+00> : vector<8xf32>
    %27 = vector.multi_reduction <add>, %26, %cst_15 [1] : vector<8x8xf32> to vector<8xf32>
    %28 = vector.shape_cast %27 : vector<8xf32> to vector<8x1xf32>
    %29 = tpu.reciprocal %28 {approx = true} : vector<8x1xf32> -> vector<8x1xf32>
    %30 = vector.extract_strided_slice %14 {offsets = [0, 0], sizes = [8, 8], strides = [1, 1]} : vector<8x32xf32> to vector<8x8xf32>
    %31 = arith.truncf %26 : vector<8x8xf32> to vector<8x8xbf16>
    %32 = arith.truncf %30 : vector<8x8xf32> to vector<8x8xbf16>
    %cst_16 = arith.constant dense<0.000000e+00> : vector<8x8xf32>
    %33 = tpu.matmul %31, %32, %cst_16 {dimension_numbers = #tpu.dot_dimension_numbers<[1], [0], [0], [1], [0, 0, 1, 1], [], []>} : vector<8x8xbf16>, vector<8x8xbf16>, vector<8x8xf32> -> vector<8x8xf32>
    %34 = vector.broadcast %29 : vector<8x1xf32> to vector<8x8xf32>
    %35 = arith.mulf %33, %34 : vector<8x8xf32>
    %c0_17 = arith.constant 0 : index
    %c0_18 = arith.constant 0 : index
    %36 = vector.load %arg30[%c0_17, %c0_18] : memref<8x32xf32, #tpu.memory_space<vmem>>, vector<8x8xf32>
    tpu.vector_store %arg30[%c0_17, %c0_18], %35 {strides = array<i32>} : memref<8x32xf32, #tpu.memory_space<vmem>>, vector<8x8xf32>,
    %37 = vector.extract_strided_slice %8 {offsets = [0, 8], sizes = [8, 8], strides = [1, 1]} : vector<8x64xf32> to vector<8x8xf32>
    %38 = vector.extract_strided_slice %8 {offsets = [0, 40], sizes = [8, 8], strides = [1, 1]} : vector<8x64xf32> to vector<8x8xf32>
    %39 = arith.truncf %37 : vector<8x8xf32> to vector<8x8xbf16>
    %40 = arith.truncf %38 : vector<8x8xf32> to vector<8x8xbf16>
    %cst_19 = arith.constant dense<0.000000e+00> : vector<8x8xf32>
    %41 = tpu.matmul %39, %40, %cst_19 {dimension_numbers = #tpu.dot_dimension_numbers<[1], [1], [0], [0], [0, 0, 1, 0], [], []>} : vector<8x8xbf16>, vector<8x8xbf16>, vector<8x8xf32> -> vector<8x8xf32>
    %cst_20 = arith.constant 0.353553385 : f32
    %42 = vector.broadcast %cst_20 : f32 to vector<8x8xf32>
    %43 = arith.mulf %41, %42 : vector<8x8xf32>
    %cst_21 = arith.constant dense<0xFF800000> : vector<8xf32>
    %44 = vector.multi_reduction <maximumf>, %43, %cst_21 [1] : vector<8x8xf32> to vector<8xf32>
    %45 = vector.shape_cast %44 : vector<8xf32> to vector<8x1xf32>
    %46 = vector.broadcast %45 : vector<8x1xf32> to vector<8x8xf32>
    %47 = arith.subf %43, %46 : vector<8x8xf32>
    %48 = math.exp %47 : vector<8x8xf32>
    %cst_22 = arith.constant dense<0.000000e+00> : vector<8xf32>
    %49 = vector.multi_reduction <add>, %48, %cst_22 [1] : vector<8x8xf32> to vector<8xf32>
    %50 = vector.shape_cast %49 : vector<8xf32> to vector<8x1xf32>
    %51 = tpu.reciprocal %50 {approx = true} : vector<8x1xf32> -> vector<8x1xf32>
    %52 = vector.extract_strided_slice %14 {offsets = [0, 8], sizes = [8, 8], strides = [1, 1]} : vector<8x32xf32> to vector<8x8xf32>
    %53 = arith.truncf %48 : vector<8x8xf32> to vector<8x8xbf16>
    %54 = arith.truncf %52 : vector<8x8xf32> to vector<8x8xbf16>
    %cst_23 = arith.constant dense<0.000000e+00> : vector<8x8xf32>
    %55 = tpu.matmul %53, %54, %cst_23 {dimension_numbers = #tpu.dot_dimension_numbers<[1], [0], [0], [1], [0, 0, 1, 1], [], []>} : vector<8x8xbf16>, vector<8x8xbf16>, vector<8x8xf32> -> vector<8x8xf32>
    %56 = vector.broadcast %51 : vector<8x1xf32> to vector<8x8xf32>
    %57 = arith.mulf %55, %56 : vector<8x8xf32>
    %c0_24 = arith.constant 0 : index
    %c8 = arith.constant 8 : index
    %58 = vector.load %arg30[%c0_24, %c8] : memref<8x32xf32, #tpu.memory_space<vmem>>, vector<8x8xf32>
    tpu.vector_store %arg30[%c0_24, %c8], %57 {strides = array<i32>} : memref<8x32xf32, #tpu.memory_space<vmem>>, vector<8x8xf32>,
    %59 = vector.extract_strided_slice %8 {offsets = [0, 16], sizes = [8, 8], strides = [1, 1]} : vector<8x64xf32> to vector<8x8xf32>
    %60 = vector.extract_strided_slice %8 {offsets = [0, 48], sizes = [8, 8], strides = [1, 1]} : vector<8x64xf32> to vector<8x8xf32>
    %61 = arith.truncf %59 : vector<8x8xf32> to vector<8x8xbf16>
    %62 = arith.truncf %60 : vector<8x8xf32> to vector<8x8xbf16>
    %cst_25 = arith.constant dense<0.000000e+00> : vector<8x8xf32>
    %63 = tpu.matmul %61, %62, %cst_25 {dimension_numbers = #tpu.dot_dimension_numbers<[1], [1], [0], [0], [0, 0, 1, 0], [], []>} : vector<8x8xbf16>, vector<8x8xbf16>, vector<8x8xf32> -> vector<8x8xf32>
    %cst_26 = arith.constant 0.353553385 : f32
    %64 = vector.broadcast %cst_26 : f32 to vector<8x8xf32>
    %65 = arith.mulf %63, %64 : vector<8x8xf32>
    %cst_27 = arith.constant dense<0xFF800000> : vector<8xf32>
    %66 = vector.multi_reduction <maximumf>, %65, %cst_27 [1] : vector<8x8xf32> to vector<8xf32>
    %67 = vector.shape_cast %66 : vector<8xf32> to vector<8x1xf32>
    %68 = vector.broadcast %67 : vector<8x1xf32> to vector<8x8xf32>
    %69 = arith.subf %65, %68 : vector<8x8xf32>
    %70 = math.exp %69 : vector<8x8xf32>
    %cst_28 = arith.constant dense<0.000000e+00> : vector<8xf32>
    %71 = vector.multi_reduction <add>, %70, %cst_28 [1] : vector<8x8xf32> to vector<8xf32>
    %72 = vector.shape_cast %71 : vector<8xf32> to vector<8x1xf32>
    %73 = tpu.reciprocal %72 {approx = true} : vector<8x1xf32> -> vector<8x1xf32>
    %74 = vector.extract_strided_slice %14 {offsets = [0, 16], sizes = [8, 8], strides = [1, 1]} : vector<8x32xf32> to vector<8x8xf32>
    %75 = arith.truncf %70 : vector<8x8xf32> to vector<8x8xbf16>
    %76 = arith.truncf %74 : vector<8x8xf32> to vector<8x8xbf16>
    %cst_29 = arith.constant dense<0.000000e+00> : vector<8x8xf32>
    %77 = tpu.matmul %75, %76, %cst_29 {dimension_numbers = #tpu.dot_dimension_numbers<[1], [0], [0], [1], [0, 0, 1, 1], [], []>} : vector<8x8xbf16>, vector<8x8xbf16>, vector<8x8xf32> -> vector<8x8xf32>
    %78 = vector.broadcast %73 : vector<8x1xf32> to vector<8x8xf32>
    %79 = arith.mulf %77, %78 : vector<8x8xf32>
    %c0_30 = arith.constant 0 : index
    %c16 = arith.constant 16 : index
    %80 = vector.load %arg30[%c0_30, %c16] : memref<8x32xf32, #tpu.memory_space<vmem>>, vector<8x8xf32>
    tpu.vector_store %arg30[%c0_30, %c16], %79 {strides = array<i32>} : memref<8x32xf32, #tpu.memory_space<vmem>>, vector<8x8xf32>,
    %81 = vector.extract_strided_slice %8 {offsets = [0, 24], sizes = [8, 8], strides = [1, 1]} : vector<8x64xf32> to vector<8x8xf32>
    %82 = vector.extract_strided_slice %8 {offsets = [0, 56], sizes = [8, 8], strides = [1, 1]} : vector<8x64xf32> to vector<8x8xf32>
    %83 = arith.truncf %81 : vector<8x8xf32> to vector<8x8xbf16>
    %84 = arith.truncf %82 : vector<8x8xf32> to vector<8x8xbf16>
    %cst_31 = arith.constant dense<0.000000e+00> : vector<8x8xf32>
    %85 = tpu.matmul %83, %84, %cst_31 {dimension_numbers = #tpu.dot_dimension_numbers<[1], [1], [0], [0], [0, 0, 1, 0], [], []>} : vector<8x8xbf16>, vector<8x8xbf16>, vector<8x8xf32> -> vector<8x8xf32>
    %cst_32 = arith.constant 0.353553385 : f32
    %86 = vector.broadcast %cst_32 : f32 to vector<8x8xf32>
    %87 = arith.mulf %85, %86 : vector<8x8xf32>
    %cst_33 = arith.constant dense<0xFF800000> : vector<8xf32>
    %88 = vector.multi_reduction <maximumf>, %87, %cst_33 [1] : vector<8x8xf32> to vector<8xf32>
    %89 = vector.shape_cast %88 : vector<8xf32> to vector<8x1xf32>
    %90 = vector.broadcast %89 : vector<8x1xf32> to vector<8x8xf32>
    %91 = arith.subf %87, %90 : vector<8x8xf32>
    %92 = math.exp %91 : vector<8x8xf32>
    %cst_34 = arith.constant dense<0.000000e+00> : vector<8xf32>
    %93 = vector.multi_reduction <add>, %92, %cst_34 [1] : vector<8x8xf32> to vector<8xf32>
    %94 = vector.shape_cast %93 : vector<8xf32> to vector<8x1xf32>
    %95 = tpu.reciprocal %94 {approx = true} : vector<8x1xf32> -> vector<8x1xf32>
    %96 = vector.extract_strided_slice %14 {offsets = [0, 24], sizes = [8, 8], strides = [1, 1]} : vector<8x32xf32> to vector<8x8xf32>
    %97 = arith.truncf %92 : vector<8x8xf32> to vector<8x8xbf16>
    %98 = arith.truncf %96 : vector<8x8xf32> to vector<8x8xbf16>
    %cst_35 = arith.constant dense<0.000000e+00> : vector<8x8xf32>
    %99 = tpu.matmul %97, %98, %cst_35 {dimension_numbers = #tpu.dot_dimension_numbers<[1], [0], [0], [1], [0, 0, 1, 1], [], []>} : vector<8x8xbf16>, vector<8x8xbf16>, vector<8x8xf32> -> vector<8x8xf32>
    %100 = vector.broadcast %95 : vector<8x1xf32> to vector<8x8xf32>
    %101 = arith.mulf %99, %100 : vector<8x8xf32>
    %c0_36 = arith.constant 0 : index
    %c24 = arith.constant 24 : index
    %102 = vector.load %arg30[%c0_36, %c24] : memref<8x32xf32, #tpu.memory_space<vmem>>, vector<8x8xf32>
    tpu.vector_store %arg30[%c0_36, %c24], %101 {strides = array<i32>} : memref<8x32xf32, #tpu.memory_space<vmem>>, vector<8x8xf32>,
    %c0_37 = arith.constant 0 : index
    %c0_38 = arith.constant 0 : index
    %103 = vector.load %arg30[%c0_37, %c0_38] : memref<8x32xf32, #tpu.memory_space<vmem>>, vector<8x32xf32>
    %c0_39 = arith.constant 0 : index
    %c0_40 = arith.constant 0 : index
    %104 = vector.load %arg8[%c0_39, %c0_40] : memref<32x32xbf16, #tpu.memory_space<vmem>>, vector<32x32xbf16>
    %105 = arith.truncf %103 : vector<8x32xf32> to vector<8x32xbf16>
    %cst_41 = arith.constant dense<0.000000e+00> : vector<8x32xf32>
    %106 = tpu.matmul %105, %104, %cst_41 {dimension_numbers = #tpu.dot_dimension_numbers<[1], [0], [0], [1], [0, 0, 1, 1], [], []>} : vector<8x32xbf16>, vector<32x32xbf16>, vector<8x32xf32> -> vector<8x32xf32>
    %c0_42 = arith.constant 0 : index
    %c0_43 = arith.constant 0 : index
    %107 = vector.load %arg9[%c0_42, %c0_43] : memref<1x32xf32, #tpu.memory_space<vmem>>, vector<1x32xf32>
    %108 = vector.broadcast %107 : vector<1x32xf32> to vector<8x32xf32>
    %109 = arith.addf %106, %108 : vector<8x32xf32>
    %c0_44 = arith.constant 0 : index
    %c0_45 = arith.constant 0 : index
    %110 = vector.load %arg31[%c0_44, %c0_45] : memref<16x32xf32, #tpu.memory_space<vmem>>, vector<8x32xf32>
    tpu.vector_store %arg31[%c0_44, %c0_45], %109 {strides = array<i32>} : memref<16x32xf32, #tpu.memory_space<vmem>>, vector<8x32xf32>,
    %c1 = arith.constant 1 : index
    %c0_46 = arith.constant 0 : index
    %111 = tpu.strided_load %arg0[%c1, %c0_46] {strides = array<i32: 2, 1>} : memref<16x32xf32, #tpu.memory_space<vmem>>, vector<8x32xf32>
    %c1_47 = arith.constant 1 : index
    %c0_48 = arith.constant 0 : index
    %112 = tpu.strided_load %arg1[%c1_47, %c0_48] {strides = array<i32: 2, 1>} : memref<16x32xf32, #tpu.memory_space<vmem>>, vector<8x32xf32>
    %113 = arith.addf %111, %112 : vector<8x32xf32>
    %c0_49 = arith.constant 0 : index
    %c0_50 = arith.constant 0 : index
    %114 = vector.load %arg4[%c0_49, %c0_50] : memref<32x64xbf16, #tpu.memory_space<vmem>>, vector<32x64xbf16>
    %115 = arith.truncf %113 : vector<8x32xf32> to vector<8x32xbf16>
    %cst_51 = arith.constant dense<0.000000e+00> : vector<8x64xf32>
    %116 = tpu.matmul %115, %114, %cst_51 {dimension_numbers = #tpu.dot_dimension_numbers<[1], [0], [0], [1], [0, 0, 1, 1], [], []>} : vector<8x32xbf16>, vector<32x64xbf16>, vector<8x64xf32> -> vector<8x64xf32>
    %c0_52 = arith.constant 0 : index
    %c0_53 = arith.constant 0 : index
    %117 = vector.load %arg5[%c0_52, %c0_53] : memref<1x64xf32, #tpu.memory_space<vmem>>, vector<1x64xf32>
    %118 = vector.broadcast %117 : vector<1x64xf32> to vector<8x64xf32>
    %119 = arith.addf %116, %118 : vector<8x64xf32>
    %c0_54 = arith.constant 0 : index
    %c0_55 = arith.constant 0 : index
    %120 = vector.load %arg6[%c0_54, %c0_55] : memref<32x32xbf16, #tpu.memory_space<vmem>>, vector<32x32xbf16>
    %121 = arith.truncf %111 : vector<8x32xf32> to vector<8x32xbf16>
    %cst_56 = arith.constant dense<0.000000e+00> : vector<8x32xf32>
    %122 = tpu.matmul %121, %120, %cst_56 {dimension_numbers = #tpu.dot_dimension_numbers<[1], [0], [0], [1], [0, 0, 1, 1], [], []>} : vector<8x32xbf16>, vector<32x32xbf16>, vector<8x32xf32> -> vector<8x32xf32>
    %c0_57 = arith.constant 0 : index
    %c0_58 = arith.constant 0 : index
    %123 = vector.load %arg7[%c0_57, %c0_58] : memref<1x32xf32, #tpu.memory_space<vmem>>, vector<1x32xf32>
    %124 = vector.broadcast %123 : vector<1x32xf32> to vector<8x32xf32>
    %125 = arith.addf %122, %124 : vector<8x32xf32>
    %126 = vector.extract_strided_slice %119 {offsets = [0, 0], sizes = [8, 8], strides = [1, 1]} : vector<8x64xf32> to vector<8x8xf32>
    %127 = vector.extract_strided_slice %119 {offsets = [0, 32], sizes = [8, 8], strides = [1, 1]} : vector<8x64xf32> to vector<8x8xf32>
    %128 = arith.truncf %126 : vector<8x8xf32> to vector<8x8xbf16>
    %129 = arith.truncf %127 : vector<8x8xf32> to vector<8x8xbf16>
    %cst_59 = arith.constant dense<0.000000e+00> : vector<8x8xf32>
    %130 = tpu.matmul %128, %129, %cst_59 {dimension_numbers = #tpu.dot_dimension_numbers<[1], [1], [0], [0], [0, 0, 1, 0], [], []>} : vector<8x8xbf16>, vector<8x8xbf16>, vector<8x8xf32> -> vector<8x8xf32>
    %cst_60 = arith.constant 0.353553385 : f32
    %131 = vector.broadcast %cst_60 : f32 to vector<8x8xf32>
    %132 = arith.mulf %130, %131 : vector<8x8xf32>
    %cst_61 = arith.constant dense<0xFF800000> : vector<8xf32>
    %133 = vector.multi_reduction <maximumf>, %132, %cst_61 [1] : vector<8x8xf32> to vector<8xf32>
    %134 = vector.shape_cast %133 : vector<8xf32> to vector<8x1xf32>
    %135 = vector.broadcast %134 : vector<8x1xf32> to vector<8x8xf32>
    %136 = arith.subf %132, %135 : vector<8x8xf32>
    %137 = math.exp %136 : vector<8x8xf32>
    %cst_62 = arith.constant dense<0.000000e+00> : vector<8xf32>
    %138 = vector.multi_reduction <add>, %137, %cst_62 [1] : vector<8x8xf32> to vector<8xf32>
    %139 = vector.shape_cast %138 : vector<8xf32> to vector<8x1xf32>
    %140 = tpu.reciprocal %139 {approx = true} : vector<8x1xf32> -> vector<8x1xf32>
    %141 = vector.extract_strided_slice %125 {offsets = [0, 0], sizes = [8, 8], strides = [1, 1]} : vector<8x32xf32> to vector<8x8xf32>
    %142 = arith.truncf %137 : vector<8x8xf32> to vector<8x8xbf16>
    %143 = arith.truncf %141 : vector<8x8xf32> to vector<8x8xbf16>
    %cst_63 = arith.constant dense<0.000000e+00> : vector<8x8xf32>
    %144 = tpu.matmul %142, %143, %cst_63 {dimension_numbers = #tpu.dot_dimension_numbers<[1], [0], [0], [1], [0, 0, 1, 1], [], []>} : vector<8x8xbf16>, vector<8x8xbf16>, vector<8x8xf32> -> vector<8x8xf32>
    %145 = vector.broadcast %140 : vector<8x1xf32> to vector<8x8xf32>
    %146 = arith.mulf %144, %145 : vector<8x8xf32>
    %c0_64 = arith.constant 0 : index
    %c0_65 = arith.constant 0 : index
    %147 = vector.load %arg30[%c0_64, %c0_65] : memref<8x32xf32, #tpu.memory_space<vmem>>, vector<8x8xf32>
    tpu.vector_store %arg30[%c0_64, %c0_65], %146 {strides = array<i32>} : memref<8x32xf32, #tpu.memory_space<vmem>>, vector<8x8xf32>,
    %148 = vector.extract_strided_slice %119 {offsets = [0, 8], sizes = [8, 8], strides = [1, 1]} : vector<8x64xf32> to vector<8x8xf32>
    %149 = vector.extract_strided_slice %119 {offsets = [0, 40], sizes = [8, 8], strides = [1, 1]} : vector<8x64xf32> to vector<8x8xf32>
    %150 = arith.truncf %148 : vector<8x8xf32> to vector<8x8xbf16>
    %151 = arith.truncf %149 : vector<8x8xf32> to vector<8x8xbf16>
    %cst_66 = arith.constant dense<0.000000e+00> : vector<8x8xf32>
    %152 = tpu.matmul %150, %151, %cst_66 {dimension_numbers = #tpu.dot_dimension_numbers<[1], [1], [0], [0], [0, 0, 1, 0], [], []>} : vector<8x8xbf16>, vector<8x8xbf16>, vector<8x8xf32> -> vector<8x8xf32>
    %cst_67 = arith.constant 0.353553385 : f32
    %153 = vector.broadcast %cst_67 : f32 to vector<8x8xf32>
    %154 = arith.mulf %152, %153 : vector<8x8xf32>
    %cst_68 = arith.constant dense<0xFF800000> : vector<8xf32>
    %155 = vector.multi_reduction <maximumf>, %154, %cst_68 [1] : vector<8x8xf32> to vector<8xf32>
    %156 = vector.shape_cast %155 : vector<8xf32> to vector<8x1xf32>
    %157 = vector.broadcast %156 : vector<8x1xf32> to vector<8x8xf32>
    %158 = arith.subf %154, %157 : vector<8x8xf32>
    %159 = math.exp %158 : vector<8x8xf32>
    %cst_69 = arith.constant dense<0.000000e+00> : vector<8xf32>
    %160 = vector.multi_reduction <add>, %159, %cst_69 [1] : vector<8x8xf32> to vector<8xf32>
    %161 = vector.shape_cast %160 : vector<8xf32> to vector<8x1xf32>
    %162 = tpu.reciprocal %161 {approx = true} : vector<8x1xf32> -> vector<8x1xf32>
    %163 = vector.extract_strided_slice %125 {offsets = [0, 8], sizes = [8, 8], strides = [1, 1]} : vector<8x32xf32> to vector<8x8xf32>
    %164 = arith.truncf %159 : vector<8x8xf32> to vector<8x8xbf16>
    %165 = arith.truncf %163 : vector<8x8xf32> to vector<8x8xbf16>
    %cst_70 = arith.constant dense<0.000000e+00> : vector<8x8xf32>
    %166 = tpu.matmul %164, %165, %cst_70 {dimension_numbers = #tpu.dot_dimension_numbers<[1], [0], [0], [1], [0, 0, 1, 1], [], []>} : vector<8x8xbf16>, vector<8x8xbf16>, vector<8x8xf32> -> vector<8x8xf32>
    %167 = vector.broadcast %162 : vector<8x1xf32> to vector<8x8xf32>
    %168 = arith.mulf %166, %167 : vector<8x8xf32>
    %c0_71 = arith.constant 0 : index
    %c8_72 = arith.constant 8 : index
    %169 = vector.load %arg30[%c0_71, %c8_72] : memref<8x32xf32, #tpu.memory_space<vmem>>, vector<8x8xf32>
    tpu.vector_store %arg30[%c0_71, %c8_72], %168 {strides = array<i32>} : memref<8x32xf32, #tpu.memory_space<vmem>>, vector<8x8xf32>,
    %170 = vector.extract_strided_slice %119 {offsets = [0, 16], sizes = [8, 8], strides = [1, 1]} : vector<8x64xf32> to vector<8x8xf32>
    %171 = vector.extract_strided_slice %119 {offsets = [0, 48], sizes = [8, 8], strides = [1, 1]} : vector<8x64xf32> to vector<8x8xf32>
    %172 = arith.truncf %170 : vector<8x8xf32> to vector<8x8xbf16>
    %173 = arith.truncf %171 : vector<8x8xf32> to vector<8x8xbf16>
    %cst_73 = arith.constant dense<0.000000e+00> : vector<8x8xf32>
    %174 = tpu.matmul %172, %173, %cst_73 {dimension_numbers = #tpu.dot_dimension_numbers<[1], [1], [0], [0], [0, 0, 1, 0], [], []>} : vector<8x8xbf16>, vector<8x8xbf16>, vector<8x8xf32> -> vector<8x8xf32>
    %cst_74 = arith.constant 0.353553385 : f32
    %175 = vector.broadcast %cst_74 : f32 to vector<8x8xf32>
    %176 = arith.mulf %174, %175 : vector<8x8xf32>
    %cst_75 = arith.constant dense<0xFF800000> : vector<8xf32>
    %177 = vector.multi_reduction <maximumf>, %176, %cst_75 [1] : vector<8x8xf32> to vector<8xf32>
    %178 = vector.shape_cast %177 : vector<8xf32> to vector<8x1xf32>
    %179 = vector.broadcast %178 : vector<8x1xf32> to vector<8x8xf32>
    %180 = arith.subf %176, %179 : vector<8x8xf32>
    %181 = math.exp %180 : vector<8x8xf32>
    %cst_76 = arith.constant dense<0.000000e+00> : vector<8xf32>
    %182 = vector.multi_reduction <add>, %181, %cst_76 [1] : vector<8x8xf32> to vector<8xf32>
    %183 = vector.shape_cast %182 : vector<8xf32> to vector<8x1xf32>
    %184 = tpu.reciprocal %183 {approx = true} : vector<8x1xf32> -> vector<8x1xf32>
    %185 = vector.extract_strided_slice %125 {offsets = [0, 16], sizes = [8, 8], strides = [1, 1]} : vector<8x32xf32> to vector<8x8xf32>
    %186 = arith.truncf %181 : vector<8x8xf32> to vector<8x8xbf16>
    %187 = arith.truncf %185 : vector<8x8xf32> to vector<8x8xbf16>
    %cst_77 = arith.constant dense<0.000000e+00> : vector<8x8xf32>
    %188 = tpu.matmul %186, %187, %cst_77 {dimension_numbers = #tpu.dot_dimension_numbers<[1], [0], [0], [1], [0, 0, 1, 1], [], []>} : vector<8x8xbf16>, vector<8x8xbf16>, vector<8x8xf32> -> vector<8x8xf32>
    %189 = vector.broadcast %184 : vector<8x1xf32> to vector<8x8xf32>
    %190 = arith.mulf %188, %189 : vector<8x8xf32>
    %c0_78 = arith.constant 0 : index
    %c16_79 = arith.constant 16 : index
    %191 = vector.load %arg30[%c0_78, %c16_79] : memref<8x32xf32, #tpu.memory_space<vmem>>, vector<8x8xf32>
    tpu.vector_store %arg30[%c0_78, %c16_79], %190 {strides = array<i32>} : memref<8x32xf32, #tpu.memory_space<vmem>>, vector<8x8xf32>,
    %192 = vector.extract_strided_slice %119 {offsets = [0, 24], sizes = [8, 8], strides = [1, 1]} : vector<8x64xf32> to vector<8x8xf32>
    %193 = vector.extract_strided_slice %119 {offsets = [0, 56], sizes = [8, 8], strides = [1, 1]} : vector<8x64xf32> to vector<8x8xf32>
    %194 = arith.truncf %192 : vector<8x8xf32> to vector<8x8xbf16>
    %195 = arith.truncf %193 : vector<8x8xf32> to vector<8x8xbf16>
    %cst_80 = arith.constant dense<0.000000e+00> : vector<8x8xf32>
    %196 = tpu.matmul %194, %195, %cst_80 {dimension_numbers = #tpu.dot_dimension_numbers<[1], [1], [0], [0], [0, 0, 1, 0], [], []>} : vector<8x8xbf16>, vector<8x8xbf16>, vector<8x8xf32> -> vector<8x8xf32>
    %cst_81 = arith.constant 0.353553385 : f32
    %197 = vector.broadcast %cst_81 : f32 to vector<8x8xf32>
    %198 = arith.mulf %196, %197 : vector<8x8xf32>
    %cst_82 = arith.constant dense<0xFF800000> : vector<8xf32>
    %199 = vector.multi_reduction <maximumf>, %198, %cst_82 [1] : vector<8x8xf32> to vector<8xf32>
    %200 = vector.shape_cast %199 : vector<8xf32> to vector<8x1xf32>
    %201 = vector.broadcast %200 : vector<8x1xf32> to vector<8x8xf32>
    %202 = arith.subf %198, %201 : vector<8x8xf32>
    %203 = math.exp %202 : vector<8x8xf32>
    %cst_83 = arith.constant dense<0.000000e+00> : vector<8xf32>
    %204 = vector.multi_reduction <add>, %203, %cst_83 [1] : vector<8x8xf32> to vector<8xf32>
    %205 = vector.shape_cast %204 : vector<8xf32> to vector<8x1xf32>
    %206 = tpu.reciprocal %205 {approx = true} : vector<8x1xf32> -> vector<8x1xf32>
    %207 = vector.extract_strided_slice %125 {offsets = [0, 24], sizes = [8, 8], strides = [1, 1]} : vector<8x32xf32> to vector<8x8xf32>
    %208 = arith.truncf %203 : vector<8x8xf32> to vector<8x8xbf16>
    %209 = arith.truncf %207 : vector<8x8xf32> to vector<8x8xbf16>
    %cst_84 = arith.constant dense<0.000000e+00> : vector<8x8xf32>
    %210 = tpu.matmul %208, %209, %cst_84 {dimension_numbers = #tpu.dot_dimension_numbers<[1], [0], [0], [1], [0, 0, 1, 1], [], []>} : vector<8x8xbf16>, vector<8x8xbf16>, vector<8x8xf32> -> vector<8x8xf32>
    %211 = vector.broadcast %206 : vector<8x1xf32> to vector<8x8xf32>
    %212 = arith.mulf %210, %211 : vector<8x8xf32>
    %c0_85 = arith.constant 0 : index
    %c24_86 = arith.constant 24 : index
    %213 = vector.load %arg30[%c0_85, %c24_86] : memref<8x32xf32, #tpu.memory_space<vmem>>, vector<8x8xf32>
    tpu.vector_store %arg30[%c0_85, %c24_86], %212 {strides = array<i32>} : memref<8x32xf32, #tpu.memory_space<vmem>>, vector<8x8xf32>,
    %c0_87 = arith.constant 0 : index
    %c0_88 = arith.constant 0 : index
    %214 = vector.load %arg30[%c0_87, %c0_88] : memref<8x32xf32, #tpu.memory_space<vmem>>, vector<8x32xf32>
    %c0_89 = arith.constant 0 : index
    %c0_90 = arith.constant 0 : index
    %215 = vector.load %arg8[%c0_89, %c0_90] : memref<32x32xbf16, #tpu.memory_space<vmem>>, vector<32x32xbf16>
    %216 = arith.truncf %214 : vector<8x32xf32> to vector<8x32xbf16>
    %cst_91 = arith.constant dense<0.000000e+00> : vector<8x32xf32>
    %217 = tpu.matmul %216, %215, %cst_91 {dimension_numbers = #tpu.dot_dimension_numbers<[1], [0], [0], [1], [0, 0, 1, 1], [], []>} : vector<8x32xbf16>, vector<32x32xbf16>, vector<8x32xf32> -> vector<8x32xf32>
    %c0_92 = arith.constant 0 : index
    %c0_93 = arith.constant 0 : index
    %218 = vector.load %arg9[%c0_92, %c0_93] : memref<1x32xf32, #tpu.memory_space<vmem>>, vector<1x32xf32>
    %219 = vector.broadcast %218 : vector<1x32xf32> to vector<8x32xf32>
    %220 = arith.addf %217, %219 : vector<8x32xf32>
    %c8_94 = arith.constant 8 : index
    %c0_95 = arith.constant 0 : index
    %221 = vector.load %arg31[%c8_94, %c0_95] : memref<16x32xf32, #tpu.memory_space<vmem>>, vector<8x32xf32>
    tpu.vector_store %arg31[%c8_94, %c0_95], %220 {strides = array<i32>} : memref<16x32xf32, #tpu.memory_space<vmem>>, vector<8x32xf32>,
    %c0_96 = arith.constant 0 : index
    %c0_97 = arith.constant 0 : index
    %222 = tpu.strided_load %arg31[%c0_96, %c0_97] {strides = array<i32: 8, 1>} : memref<16x32xf32, #tpu.memory_space<vmem>>, vector<2x32xf32>
    %c0_98 = arith.constant 0 : index
    %c0_99 = arith.constant 0 : index
    %223 = vector.load %arg32[%c0_98, %c0_99] : memref<16x32xf32, #tpu.memory_space<vmem>>, vector<2x32xf32>
    tpu.vector_store %arg32[%c0_98, %c0_99], %222 {strides = array<i32>} : memref<16x32xf32, #tpu.memory_space<vmem>>, vector<2x32xf32>,
    %c1_100 = arith.constant 1 : index
    %c0_101 = arith.constant 0 : index
    %224 = tpu.strided_load %arg31[%c1_100, %c0_101] {strides = array<i32: 8, 1>} : memref<16x32xf32, #tpu.memory_space<vmem>>, vector<2x32xf32>
    %c2 = arith.constant 2 : index
    %c0_102 = arith.constant 0 : index
    %225 = vector.load %arg32[%c2, %c0_102] : memref<16x32xf32, #tpu.memory_space<vmem>>, vector<2x32xf32>
    tpu.vector_store %arg32[%c2, %c0_102], %224 {strides = array<i32>} : memref<16x32xf32, #tpu.memory_space<vmem>>, vector<2x32xf32>,
    %c2_103 = arith.constant 2 : index
    %c0_104 = arith.constant 0 : index
    %226 = tpu.strided_load %arg31[%c2_103, %c0_104] {strides = array<i32: 8, 1>} : memref<16x32xf32, #tpu.memory_space<vmem>>, vector<2x32xf32>
    %c4 = arith.constant 4 : index
    %c0_105 = arith.constant 0 : index
    %227 = vector.load %arg32[%c4, %c0_105] : memref<16x32xf32, #tpu.memory_space<vmem>>, vector<2x32xf32>
    tpu.vector_store %arg32[%c4, %c0_105], %226 {strides = array<i32>} : memref<16x32xf32, #tpu.memory_space<vmem>>, vector<2x32xf32>,
    %c3 = arith.constant 3 : index
    %c0_106 = arith.constant 0 : index
    %228 = tpu.strided_load %arg31[%c3, %c0_106] {strides = array<i32: 8, 1>} : memref<16x32xf32, #tpu.memory_space<vmem>>, vector<2x32xf32>
    %c6 = arith.constant 6 : index
    %c0_107 = arith.constant 0 : index
    %229 = vector.load %arg32[%c6, %c0_107] : memref<16x32xf32, #tpu.memory_space<vmem>>, vector<2x32xf32>
    tpu.vector_store %arg32[%c6, %c0_107], %228 {strides = array<i32>} : memref<16x32xf32, #tpu.memory_space<vmem>>, vector<2x32xf32>,
    %c4_108 = arith.constant 4 : index
    %c0_109 = arith.constant 0 : index
    %230 = tpu.strided_load %arg31[%c4_108, %c0_109] {strides = array<i32: 8, 1>} : memref<16x32xf32, #tpu.memory_space<vmem>>, vector<2x32xf32>
    %c8_110 = arith.constant 8 : index
    %c0_111 = arith.constant 0 : index
    %231 = vector.load %arg32[%c8_110, %c0_111] : memref<16x32xf32, #tpu.memory_space<vmem>>, vector<2x32xf32>
    tpu.vector_store %arg32[%c8_110, %c0_111], %230 {strides = array<i32>} : memref<16x32xf32, #tpu.memory_space<vmem>>, vector<2x32xf32>,
    %c5 = arith.constant 5 : index
    %c0_112 = arith.constant 0 : index
    %232 = tpu.strided_load %arg31[%c5, %c0_112] {strides = array<i32: 8, 1>} : memref<16x32xf32, #tpu.memory_space<vmem>>, vector<2x32xf32>
    %c10 = arith.constant 10 : index
    %c0_113 = arith.constant 0 : index
    %233 = vector.load %arg32[%c10, %c0_113] : memref<16x32xf32, #tpu.memory_space<vmem>>, vector<2x32xf32>
    tpu.vector_store %arg32[%c10, %c0_113], %232 {strides = array<i32>} : memref<16x32xf32, #tpu.memory_space<vmem>>, vector<2x32xf32>,
    %c6_114 = arith.constant 6 : index
    %c0_115 = arith.constant 0 : index
    %234 = tpu.strided_load %arg31[%c6_114, %c0_115] {strides = array<i32: 8, 1>} : memref<16x32xf32, #tpu.memory_space<vmem>>, vector<2x32xf32>
    %c12 = arith.constant 12 : index
    %c0_116 = arith.constant 0 : index
    %235 = vector.load %arg32[%c12, %c0_116] : memref<16x32xf32, #tpu.memory_space<vmem>>, vector<2x32xf32>
    tpu.vector_store %arg32[%c12, %c0_116], %234 {strides = array<i32>} : memref<16x32xf32, #tpu.memory_space<vmem>>, vector<2x32xf32>,
    %c7 = arith.constant 7 : index
    %c0_117 = arith.constant 0 : index
    %236 = tpu.strided_load %arg31[%c7, %c0_117] {strides = array<i32: 8, 1>} : memref<16x32xf32, #tpu.memory_space<vmem>>, vector<2x32xf32>
    %c14 = arith.constant 14 : index
    %c0_118 = arith.constant 0 : index
    %237 = vector.load %arg32[%c14, %c0_118] : memref<16x32xf32, #tpu.memory_space<vmem>>, vector<2x32xf32>
    tpu.vector_store %arg32[%c14, %c0_118], %236 {strides = array<i32>} : memref<16x32xf32, #tpu.memory_space<vmem>>, vector<2x32xf32>,
    %c0_119 = arith.constant 0 : index
    %c0_120 = arith.constant 0 : index
    %238 = vector.load %arg0[%c0_119, %c0_120] : memref<16x32xf32, #tpu.memory_space<vmem>>, vector<16x32xf32>
    %c0_121 = arith.constant 0 : index
    %c0_122 = arith.constant 0 : index
    %239 = vector.load %arg32[%c0_121, %c0_122] : memref<16x32xf32, #tpu.memory_space<vmem>>, vector<16x32xf32>
    %240 = arith.addf %238, %239 : vector<16x32xf32>
    %c0_123 = arith.constant 0 : index
    %c0_124 = arith.constant 0 : index
    %241 = vector.load %arg18[%c0_123, %c0_124] : memref<1x32xf32, #tpu.memory_space<vmem>>, vector<1x32xf32>
    %c0_125 = arith.constant 0 : index
    %c0_126 = arith.constant 0 : index
    %242 = vector.load %arg19[%c0_125, %c0_126] : memref<1x32xf32, #tpu.memory_space<vmem>>, vector<1x32xf32>
    %cst_127 = arith.constant dense<0.000000e+00> : vector<16xf32>
    %243 = vector.multi_reduction <add>, %240, %cst_127 [1] : vector<16x32xf32> to vector<16xf32>
    %244 = vector.shape_cast %243 : vector<16xf32> to vector<16x1xf32>
    %cst_128 = arith.constant 3.200000e+01 : f32
    %245 = vector.broadcast %cst_128 : f32 to vector<16x1xf32>
    %246 = arith.divf %244, %245 : vector<16x1xf32>
    %247 = vector.broadcast %246 : vector<16x1xf32> to vector<16x32xf32>
    %248 = arith.subf %240, %247 : vector<16x32xf32>
    %249 = arith.mulf %248, %248 : vector<16x32xf32>
    %cst_129 = arith.constant dense<0.000000e+00> : vector<16xf32>
    %250 = vector.multi_reduction <add>, %249, %cst_129 [1] : vector<16x32xf32> to vector<16xf32>
    %251 = vector.shape_cast %250 : vector<16xf32> to vector<16x1xf32>
    %cst_130 = arith.constant 3.200000e+01 : f32
    %252 = vector.broadcast %cst_130 : f32 to vector<16x1xf32>
    %253 = arith.divf %251, %252 : vector<16x1xf32>
    %cst_131 = arith.constant 9.99999974E-6 : f32
    %254 = vector.broadcast %cst_131 : f32 to vector<16x1xf32>
    %255 = arith.addf %253, %254 : vector<16x1xf32>
    %256 = math.rsqrt %255 : vector<16x1xf32>
    %257 = vector.broadcast %256 : vector<16x1xf32> to vector<16x32xf32>
    %258 = arith.mulf %248, %257 : vector<16x32xf32>
    %259 = vector.broadcast %241 : vector<1x32xf32> to vector<16x32xf32>
    %260 = arith.mulf %258, %259 : vector<16x32xf32>
    %261 = vector.broadcast %242 : vector<1x32xf32> to vector<16x32xf32>
    %262 = arith.addf %260, %261 : vector<16x32xf32>
    %c0_132 = arith.constant 0 : index
    %c0_133 = arith.constant 0 : index
    %263 = vector.load %arg1[%c0_132, %c0_133] : memref<16x32xf32, #tpu.memory_space<vmem>>, vector<16x32xf32>
    %264 = arith.addf %262, %263 : vector<16x32xf32>
    %c0_134 = arith.constant 0 : index
    %c0_135 = arith.constant 0 : index
    %265 = vector.load %arg10[%c0_134, %c0_135] : memref<32x32xbf16, #tpu.memory_space<vmem>>, vector<32x32xbf16>
    %266 = arith.truncf %264 : vector<16x32xf32> to vector<16x32xbf16>
    %cst_136 = arith.constant dense<0.000000e+00> : vector<16x32xf32>
    %267 = tpu.matmul %266, %265, %cst_136 {dimension_numbers = #tpu.dot_dimension_numbers<[1], [0], [0], [1], [0, 0, 1, 1], [], []>} : vector<16x32xbf16>, vector<32x32xbf16>, vector<16x32xf32> -> vector<16x32xf32>
    %c0_137 = arith.constant 0 : index
    %c0_138 = arith.constant 0 : index
    %268 = vector.load %arg11[%c0_137, %c0_138] : memref<1x32xf32, #tpu.memory_space<vmem>>, vector<1x32xf32>
    %269 = vector.broadcast %268 : vector<1x32xf32> to vector<16x32xf32>
    %270 = arith.addf %267, %269 : vector<16x32xf32>
    %c0_139 = arith.constant 0 : index
    %c0_140 = arith.constant 0 : index
    %271 = vector.load %arg33[%c0_139, %c0_140] : memref<16x32xf32, #tpu.memory_space<vmem>>, vector<16x32xf32>
    tpu.vector_store %arg33[%c0_139, %c0_140], %270 {strides = array<i32>} : memref<16x32xf32, #tpu.memory_space<vmem>>, vector<16x32xf32>,
    %c0_141 = arith.constant 0 : index
    %c0_142 = arith.constant 0 : index
    %272 = vector.load %arg2[%c0_141, %c0_142] : memref<16x32xf32, #tpu.memory_space<vmem>>, vector<16x32xf32>
    %c0_143 = arith.constant 0 : index
    %c0_144 = arith.constant 0 : index
    %273 = vector.load %arg3[%c0_143, %c0_144] : memref<16x32xf32, #tpu.memory_space<vmem>>, vector<16x32xf32>
    %274 = arith.addf %272, %273 : vector<16x32xf32>
    %c0_145 = arith.constant 0 : index
    %c0_146 = arith.constant 0 : index
    %275 = vector.load %arg12[%c0_145, %c0_146] : memref<32x32xbf16, #tpu.memory_space<vmem>>, vector<32x32xbf16>
    %276 = arith.truncf %274 : vector<16x32xf32> to vector<16x32xbf16>
    %cst_147 = arith.constant dense<0.000000e+00> : vector<16x32xf32>
    %277 = tpu.matmul %276, %275, %cst_147 {dimension_numbers = #tpu.dot_dimension_numbers<[1], [0], [0], [1], [0, 0, 1, 1], [], []>} : vector<16x32xbf16>, vector<32x32xbf16>, vector<16x32xf32> -> vector<16x32xf32>
    %c0_148 = arith.constant 0 : index
    %c0_149 = arith.constant 0 : index
    %278 = vector.load %arg13[%c0_148, %c0_149] : memref<1x32xf32, #tpu.memory_space<vmem>>, vector<1x32xf32>
    %279 = vector.broadcast %278 : vector<1x32xf32> to vector<16x32xf32>
    %280 = arith.addf %277, %279 : vector<16x32xf32>
    %c0_150 = arith.constant 0 : index
    %c0_151 = arith.constant 0 : index
    %281 = vector.load %arg34[%c0_150, %c0_151] : memref<16x32xf32, #tpu.memory_space<vmem>>, vector<16x32xf32>
    tpu.vector_store %arg34[%c0_150, %c0_151], %280 {strides = array<i32>} : memref<16x32xf32, #tpu.memory_space<vmem>>, vector<16x32xf32>,
    %c0_152 = arith.constant 0 : index
    %c0_153 = arith.constant 0 : index
    %282 = vector.load %arg2[%c0_152, %c0_153] : memref<16x32xf32, #tpu.memory_space<vmem>>, vector<16x32xf32>
    %c0_154 = arith.constant 0 : index
    %c0_155 = arith.constant 0 : index
    %283 = vector.load %arg14[%c0_154, %c0_155] : memref<32x32xbf16, #tpu.memory_space<vmem>>, vector<32x32xbf16>
    %284 = arith.truncf %282 : vector<16x32xf32> to vector<16x32xbf16>
    %cst_156 = arith.constant dense<0.000000e+00> : vector<16x32xf32>
    %285 = tpu.matmul %284, %283, %cst_156 {dimension_numbers = #tpu.dot_dimension_numbers<[1], [0], [0], [1], [0, 0, 1, 1], [], []>} : vector<16x32xbf16>, vector<32x32xbf16>, vector<16x32xf32> -> vector<16x32xf32>
    %c0_157 = arith.constant 0 : index
    %c0_158 = arith.constant 0 : index
    %286 = vector.load %arg15[%c0_157, %c0_158] : memref<1x32xf32, #tpu.memory_space<vmem>>, vector<1x32xf32>
    %287 = vector.broadcast %286 : vector<1x32xf32> to vector<16x32xf32>
    %288 = arith.addf %285, %287 : vector<16x32xf32>
    %c0_159 = arith.constant 0 : index
    %c0_160 = arith.constant 0 : index
    %289 = vector.load %arg35[%c0_159, %c0_160] : memref<16x32xf32, #tpu.memory_space<vmem>>, vector<16x32xf32>
    tpu.vector_store %arg35[%c0_159, %c0_160], %288 {strides = array<i32>} : memref<16x32xf32, #tpu.memory_space<vmem>>, vector<16x32xf32>,
    %c0_i32 = arith.constant 0 : i32
    %c8_i32 = arith.constant 8 : i32
    %290 = arith.addi %c0_i32, %c8_i32 : i32
    %c1_i32 = arith.constant 1 : i32
    scf.for %arg38 = %c0_i32 to %290 step %c1_i32  : i32 {
      %c2_i32 = arith.constant 2 : i32
      %359 = arith.muli %arg38, %c2_i32 : i32
      %360 = tpu.assume_multiple %359, 2 : i32
      %361 = arith.index_cast %360 : i32 to index
      %c0_200 = arith.constant 0 : index
      %362 = vector.load %arg33[%361, %c0_200] : memref<16x32xf32, #tpu.memory_space<vmem>>, vector<2x32xf32>
      %363 = arith.index_cast %360 : i32 to index
      %c0_201 = arith.constant 0 : index
      %364 = vector.load %arg34[%363, %c0_201] : memref<16x32xf32, #tpu.memory_space<vmem>>, vector<2x32xf32>
      %365 = arith.index_cast %360 : i32 to index
      %c0_202 = arith.constant 0 : index
      %366 = vector.load %arg35[%365, %c0_202] : memref<16x32xf32, #tpu.memory_space<vmem>>, vector<2x32xf32>
      %cst_203 = arith.constant 0.000000e+00 : f32
      %367 = vector.broadcast %cst_203 : f32 to vector<2x2xf32>
      %368 = vector.extract_strided_slice %362 {offsets = [0, 0], sizes = [2, 8], strides = [1, 1]} : vector<2x32xf32> to vector<2x8xf32>
      %369 = vector.extract_strided_slice %364 {offsets = [0, 0], sizes = [2, 8], strides = [1, 1]} : vector<2x32xf32> to vector<2x8xf32>
      %370 = arith.truncf %368 : vector<2x8xf32> to vector<2x8xbf16>
      %371 = arith.truncf %369 : vector<2x8xf32> to vector<2x8xbf16>
      %cst_204 = arith.constant dense<0.000000e+00> : vector<2x2xf32>
      %372 = tpu.matmul %370, %371, %cst_204 {dimension_numbers = #tpu.dot_dimension_numbers<[1], [1], [0], [0], [0, 0, 1, 0], [], []>} : vector<2x8xbf16>, vector<2x8xbf16>, vector<2x2xf32> -> vector<2x2xf32>
      %cst_205 = arith.constant 0.353553385 : f32
      %373 = vector.broadcast %cst_205 : f32 to vector<2x2xf32>
      %374 = arith.mulf %372, %373 : vector<2x2xf32>
      %cst_206 = arith.constant dense<0xFF800000> : vector<2xf32>
      %375 = vector.multi_reduction <maximumf>, %374, %cst_206 [1] : vector<2x2xf32> to vector<2xf32>
      %376 = vector.shape_cast %375 : vector<2xf32> to vector<2x1xf32>
      %377 = vector.broadcast %376 : vector<2x1xf32> to vector<2x2xf32>
      %378 = arith.subf %374, %377 : vector<2x2xf32>
      %379 = math.exp %378 : vector<2x2xf32>
      %cst_207 = arith.constant dense<0.000000e+00> : vector<2xf32>
      %380 = vector.multi_reduction <add>, %379, %cst_207 [1] : vector<2x2xf32> to vector<2xf32>
      %381 = vector.shape_cast %380 : vector<2xf32> to vector<2x1xf32>
      %382 = vector.broadcast %381 : vector<2x1xf32> to vector<2x2xf32>
      %383 = arith.divf %379, %382 : vector<2x2xf32>
      %384 = vector.extract_strided_slice %366 {offsets = [0, 0], sizes = [2, 8], strides = [1, 1]} : vector<2x32xf32> to vector<2x8xf32>
      %385 = arith.truncf %383 : vector<2x2xf32> to vector<2x2xbf16>
      %386 = arith.truncf %384 : vector<2x8xf32> to vector<2x8xbf16>
      %cst_208 = arith.constant dense<0.000000e+00> : vector<2x8xf32>
      %387 = tpu.matmul %385, %386, %cst_208 {dimension_numbers = #tpu.dot_dimension_numbers<[1], [0], [0], [1], [0, 0, 1, 1], [], []>} : vector<2x2xbf16>, vector<2x8xbf16>, vector<2x8xf32> -> vector<2x8xf32>
      %c0_209 = arith.constant 0 : index
      %c0_210 = arith.constant 0 : index
      %388 = vector.load %arg36[%c0_209, %c0_210] : memref<2x32xf32, #tpu.memory_space<vmem>>, vector<2x8xf32>
      tpu.vector_store %arg36[%c0_209, %c0_210], %387 {strides = array<i32>} : memref<2x32xf32, #tpu.memory_space<vmem>>, vector<2x8xf32>,
      %389 = arith.addf %367, %383 : vector<2x2xf32>
      %390 = vector.extract_strided_slice %362 {offsets = [0, 8], sizes = [2, 8], strides = [1, 1]} : vector<2x32xf32> to vector<2x8xf32>
      %391 = vector.extract_strided_slice %364 {offsets = [0, 8], sizes = [2, 8], strides = [1, 1]} : vector<2x32xf32> to vector<2x8xf32>
      %392 = arith.truncf %390 : vector<2x8xf32> to vector<2x8xbf16>
      %393 = arith.truncf %391 : vector<2x8xf32> to vector<2x8xbf16>
      %cst_211 = arith.constant dense<0.000000e+00> : vector<2x2xf32>
      %394 = tpu.matmul %392, %393, %cst_211 {dimension_numbers = #tpu.dot_dimension_numbers<[1], [1], [0], [0], [0, 0, 1, 0], [], []>} : vector<2x8xbf16>, vector<2x8xbf16>, vector<2x2xf32> -> vector<2x2xf32>
      %cst_212 = arith.constant 0.353553385 : f32
      %395 = vector.broadcast %cst_212 : f32 to vector<2x2xf32>
      %396 = arith.mulf %394, %395 : vector<2x2xf32>
      %cst_213 = arith.constant dense<0xFF800000> : vector<2xf32>
      %397 = vector.multi_reduction <maximumf>, %396, %cst_213 [1] : vector<2x2xf32> to vector<2xf32>
      %398 = vector.shape_cast %397 : vector<2xf32> to vector<2x1xf32>
      %399 = vector.broadcast %398 : vector<2x1xf32> to vector<2x2xf32>
      %400 = arith.subf %396, %399 : vector<2x2xf32>
      %401 = math.exp %400 : vector<2x2xf32>
      %cst_214 = arith.constant dense<0.000000e+00> : vector<2xf32>
      %402 = vector.multi_reduction <add>, %401, %cst_214 [1] : vector<2x2xf32> to vector<2xf32>
      %403 = vector.shape_cast %402 : vector<2xf32> to vector<2x1xf32>
      %404 = vector.broadcast %403 : vector<2x1xf32> to vector<2x2xf32>
      %405 = arith.divf %401, %404 : vector<2x2xf32>
      %406 = vector.extract_strided_slice %366 {offsets = [0, 8], sizes = [2, 8], strides = [1, 1]} : vector<2x32xf32> to vector<2x8xf32>
      %407 = arith.truncf %405 : vector<2x2xf32> to vector<2x2xbf16>
      %408 = arith.truncf %406 : vector<2x8xf32> to vector<2x8xbf16>
      %cst_215 = arith.constant dense<0.000000e+00> : vector<2x8xf32>
      %409 = tpu.matmul %407, %408, %cst_215 {dimension_numbers = #tpu.dot_dimension_numbers<[1], [0], [0], [1], [0, 0, 1, 1], [], []>} : vector<2x2xbf16>, vector<2x8xbf16>, vector<2x8xf32> -> vector<2x8xf32>
      %c0_216 = arith.constant 0 : index
      %c8_217 = arith.constant 8 : index
      %410 = vector.load %arg36[%c0_216, %c8_217] : memref<2x32xf32, #tpu.memory_space<vmem>>, vector<2x8xf32>
      tpu.vector_store %arg36[%c0_216, %c8_217], %409 {strides = array<i32>} : memref<2x32xf32, #tpu.memory_space<vmem>>, vector<2x8xf32>,
      %411 = arith.addf %389, %405 : vector<2x2xf32>
      %412 = vector.extract_strided_slice %362 {offsets = [0, 16], sizes = [2, 8], strides = [1, 1]} : vector<2x32xf32> to vector<2x8xf32>
      %413 = vector.extract_strided_slice %364 {offsets = [0, 16], sizes = [2, 8], strides = [1, 1]} : vector<2x32xf32> to vector<2x8xf32>
      %414 = arith.truncf %412 : vector<2x8xf32> to vector<2x8xbf16>
      %415 = arith.truncf %413 : vector<2x8xf32> to vector<2x8xbf16>
      %cst_218 = arith.constant dense<0.000000e+00> : vector<2x2xf32>
      %416 = tpu.matmul %414, %415, %cst_218 {dimension_numbers = #tpu.dot_dimension_numbers<[1], [1], [0], [0], [0, 0, 1, 0], [], []>} : vector<2x8xbf16>, vector<2x8xbf16>, vector<2x2xf32> -> vector<2x2xf32>
      %cst_219 = arith.constant 0.353553385 : f32
      %417 = vector.broadcast %cst_219 : f32 to vector<2x2xf32>
      %418 = arith.mulf %416, %417 : vector<2x2xf32>
      %cst_220 = arith.constant dense<0xFF800000> : vector<2xf32>
      %419 = vector.multi_reduction <maximumf>, %418, %cst_220 [1] : vector<2x2xf32> to vector<2xf32>
      %420 = vector.shape_cast %419 : vector<2xf32> to vector<2x1xf32>
      %421 = vector.broadcast %420 : vector<2x1xf32> to vector<2x2xf32>
      %422 = arith.subf %418, %421 : vector<2x2xf32>
      %423 = math.exp %422 : vector<2x2xf32>
      %cst_221 = arith.constant dense<0.000000e+00> : vector<2xf32>
      %424 = vector.multi_reduction <add>, %423, %cst_221 [1] : vector<2x2xf32> to vector<2xf32>
      %425 = vector.shape_cast %424 : vector<2xf32> to vector<2x1xf32>
      %426 = vector.broadcast %425 : vector<2x1xf32> to vector<2x2xf32>
      %427 = arith.divf %423, %426 : vector<2x2xf32>
      %428 = vector.extract_strided_slice %366 {offsets = [0, 16], sizes = [2, 8], strides = [1, 1]} : vector<2x32xf32> to vector<2x8xf32>
      %429 = arith.truncf %427 : vector<2x2xf32> to vector<2x2xbf16>
      %430 = arith.truncf %428 : vector<2x8xf32> to vector<2x8xbf16>
      %cst_222 = arith.constant dense<0.000000e+00> : vector<2x8xf32>
      %431 = tpu.matmul %429, %430, %cst_222 {dimension_numbers = #tpu.dot_dimension_numbers<[1], [0], [0], [1], [0, 0, 1, 1], [], []>} : vector<2x2xbf16>, vector<2x8xbf16>, vector<2x8xf32> -> vector<2x8xf32>
      %c0_223 = arith.constant 0 : index
      %c16_224 = arith.constant 16 : index
      %432 = vector.load %arg36[%c0_223, %c16_224] : memref<2x32xf32, #tpu.memory_space<vmem>>, vector<2x8xf32>
      tpu.vector_store %arg36[%c0_223, %c16_224], %431 {strides = array<i32>} : memref<2x32xf32, #tpu.memory_space<vmem>>, vector<2x8xf32>,
      %433 = arith.addf %411, %427 : vector<2x2xf32>
      %434 = vector.extract_strided_slice %362 {offsets = [0, 24], sizes = [2, 8], strides = [1, 1]} : vector<2x32xf32> to vector<2x8xf32>
      %435 = vector.extract_strided_slice %364 {offsets = [0, 24], sizes = [2, 8], strides = [1, 1]} : vector<2x32xf32> to vector<2x8xf32>
      %436 = arith.truncf %434 : vector<2x8xf32> to vector<2x8xbf16>
      %437 = arith.truncf %435 : vector<2x8xf32> to vector<2x8xbf16>
      %cst_225 = arith.constant dense<0.000000e+00> : vector<2x2xf32>
      %438 = tpu.matmul %436, %437, %cst_225 {dimension_numbers = #tpu.dot_dimension_numbers<[1], [1], [0], [0], [0, 0, 1, 0], [], []>} : vector<2x8xbf16>, vector<2x8xbf16>, vector<2x2xf32> -> vector<2x2xf32>
      %cst_226 = arith.constant 0.353553385 : f32
      %439 = vector.broadcast %cst_226 : f32 to vector<2x2xf32>
      %440 = arith.mulf %438, %439 : vector<2x2xf32>
      %cst_227 = arith.constant dense<0xFF800000> : vector<2xf32>
      %441 = vector.multi_reduction <maximumf>, %440, %cst_227 [1] : vector<2x2xf32> to vector<2xf32>
      %442 = vector.shape_cast %441 : vector<2xf32> to vector<2x1xf32>
      %443 = vector.broadcast %442 : vector<2x1xf32> to vector<2x2xf32>
      %444 = arith.subf %440, %443 : vector<2x2xf32>
      %445 = math.exp %444 : vector<2x2xf32>
      %cst_228 = arith.constant dense<0.000000e+00> : vector<2xf32>
      %446 = vector.multi_reduction <add>, %445, %cst_228 [1] : vector<2x2xf32> to vector<2xf32>
      %447 = vector.shape_cast %446 : vector<2xf32> to vector<2x1xf32>
      %448 = vector.broadcast %447 : vector<2x1xf32> to vector<2x2xf32>
      %449 = arith.divf %445, %448 : vector<2x2xf32>
      %450 = vector.extract_strided_slice %366 {offsets = [0, 24], sizes = [2, 8], strides = [1, 1]} : vector<2x32xf32> to vector<2x8xf32>
      %451 = arith.truncf %449 : vector<2x2xf32> to vector<2x2xbf16>
      %452 = arith.truncf %450 : vector<2x8xf32> to vector<2x8xbf16>
      %cst_229 = arith.constant dense<0.000000e+00> : vector<2x8xf32>
      %453 = tpu.matmul %451, %452, %cst_229 {dimension_numbers = #tpu.dot_dimension_numbers<[1], [0], [0], [1], [0, 0, 1, 1], [], []>} : vector<2x2xbf16>, vector<2x8xbf16>, vector<2x8xf32> -> vector<2x8xf32>
      %c0_230 = arith.constant 0 : index
      %c24_231 = arith.constant 24 : index
      %454 = vector.load %arg36[%c0_230, %c24_231] : memref<2x32xf32, #tpu.memory_space<vmem>>, vector<2x8xf32>
      tpu.vector_store %arg36[%c0_230, %c24_231], %453 {strides = array<i32>} : memref<2x32xf32, #tpu.memory_space<vmem>>, vector<2x8xf32>,
      %455 = arith.addf %433, %449 : vector<2x2xf32>
      %c0_232 = arith.constant 0 : index
      %c0_233 = arith.constant 0 : index
      %456 = vector.load %arg36[%c0_232, %c0_233] : memref<2x32xf32, #tpu.memory_space<vmem>>, vector<2x32xf32>
      %457 = arith.index_cast %360 : i32 to index
      %c0_234 = arith.constant 0 : index
      %458 = vector.load %arg37[%457, %c0_234] : memref<16x32xf32, #tpu.memory_space<vmem>>, vector<2x32xf32>
      tpu.vector_store %arg37[%457, %c0_234], %456 {strides = array<i32>} : memref<16x32xf32, #tpu.memory_space<vmem>>, vector<2x32xf32>,
      %cst_235 = arith.constant 2.500000e-01 : f32
      %459 = vector.broadcast %cst_235 : f32 to vector<2x2xf32>
      %460 = arith.mulf %455, %459 : vector<2x2xf32>
      %461 = arith.index_cast %360 : i32 to index
      %c0_236 = arith.constant 0 : index
      %462 = vector.load %arg29[%461, %c0_236] : memref<16x2xf32, #tpu.memory_space<vmem>>, vector<2x2xf32>
      tpu.vector_store %arg29[%461, %c0_236], %460 {strides = array<i32>} : memref<16x2xf32, #tpu.memory_space<vmem>>, vector<2x2xf32>,
    }
    %c8_i32_161 = arith.constant 8 : i32
    %c0_162 = arith.constant 0 : index
    %c0_163 = arith.constant 0 : index
    %291 = vector.load %arg37[%c0_162, %c0_163] : memref<16x32xf32, #tpu.memory_space<vmem>>, vector<16x32xf32>
    %c0_164 = arith.constant 0 : index
    %c0_165 = arith.constant 0 : index
    %292 = vector.load %arg16[%c0_164, %c0_165] : memref<32x32xbf16, #tpu.memory_space<vmem>>, vector<32x32xbf16>
    %293 = arith.truncf %291 : vector<16x32xf32> to vector<16x32xbf16>
    %cst_166 = arith.constant dense<0.000000e+00> : vector<16x32xf32>
    %294 = tpu.matmul %293, %292, %cst_166 {dimension_numbers = #tpu.dot_dimension_numbers<[1], [0], [0], [1], [0, 0, 1, 1], [], []>} : vector<16x32xbf16>, vector<32x32xbf16>, vector<16x32xf32> -> vector<16x32xf32>
    %c0_167 = arith.constant 0 : index
    %c0_168 = arith.constant 0 : index
    %295 = vector.load %arg17[%c0_167, %c0_168] : memref<1x32xf32, #tpu.memory_space<vmem>>, vector<1x32xf32>
    %296 = vector.broadcast %295 : vector<1x32xf32> to vector<16x32xf32>
    %297 = arith.addf %294, %296 : vector<16x32xf32>
    %298 = arith.addf %262, %297 : vector<16x32xf32>
    %c0_169 = arith.constant 0 : index
    %c0_170 = arith.constant 0 : index
    %299 = vector.load %arg20[%c0_169, %c0_170] : memref<1x32xf32, #tpu.memory_space<vmem>>, vector<1x32xf32>
    %c0_171 = arith.constant 0 : index
    %c0_172 = arith.constant 0 : index
    %300 = vector.load %arg21[%c0_171, %c0_172] : memref<1x32xf32, #tpu.memory_space<vmem>>, vector<1x32xf32>
    %cst_173 = arith.constant dense<0.000000e+00> : vector<16xf32>
    %301 = vector.multi_reduction <add>, %298, %cst_173 [1] : vector<16x32xf32> to vector<16xf32>
    %302 = vector.shape_cast %301 : vector<16xf32> to vector<16x1xf32>
    %cst_174 = arith.constant 3.200000e+01 : f32
    %303 = vector.broadcast %cst_174 : f32 to vector<16x1xf32>
    %304 = arith.divf %302, %303 : vector<16x1xf32>
    %305 = vector.broadcast %304 : vector<16x1xf32> to vector<16x32xf32>
    %306 = arith.subf %298, %305 : vector<16x32xf32>
    %307 = arith.mulf %306, %306 : vector<16x32xf32>
    %cst_175 = arith.constant dense<0.000000e+00> : vector<16xf32>
    %308 = vector.multi_reduction <add>, %307, %cst_175 [1] : vector<16x32xf32> to vector<16xf32>
    %309 = vector.shape_cast %308 : vector<16xf32> to vector<16x1xf32>
    %cst_176 = arith.constant 3.200000e+01 : f32
    %310 = vector.broadcast %cst_176 : f32 to vector<16x1xf32>
    %311 = arith.divf %309, %310 : vector<16x1xf32>
    %cst_177 = arith.constant 9.99999974E-6 : f32
    %312 = vector.broadcast %cst_177 : f32 to vector<16x1xf32>
    %313 = arith.addf %311, %312 : vector<16x1xf32>
    %314 = math.rsqrt %313 : vector<16x1xf32>
    %315 = vector.broadcast %314 : vector<16x1xf32> to vector<16x32xf32>
    %316 = arith.mulf %306, %315 : vector<16x32xf32>
    %317 = vector.broadcast %299 : vector<1x32xf32> to vector<16x32xf32>
    %318 = arith.mulf %316, %317 : vector<16x32xf32>
    %319 = vector.broadcast %300 : vector<1x32xf32> to vector<16x32xf32>
    %320 = arith.addf %318, %319 : vector<16x32xf32>
    %c0_178 = arith.constant 0 : index
    %c0_179 = arith.constant 0 : index
    %321 = vector.load %arg24[%c0_178, %c0_179] : memref<32x64xbf16, #tpu.memory_space<vmem>>, vector<32x64xbf16>
    %322 = arith.truncf %320 : vector<16x32xf32> to vector<16x32xbf16>
    %cst_180 = arith.constant dense<0.000000e+00> : vector<16x64xf32>
    %323 = tpu.matmul %322, %321, %cst_180 {dimension_numbers = #tpu.dot_dimension_numbers<[1], [0], [0], [1], [0, 0, 1, 1], [], []>} : vector<16x32xbf16>, vector<32x64xbf16>, vector<16x64xf32> -> vector<16x64xf32>
    %c0_181 = arith.constant 0 : index
    %c0_182 = arith.constant 0 : index
    %324 = vector.load %arg25[%c0_181, %c0_182] : memref<1x64xf32, #tpu.memory_space<vmem>>, vector<1x64xf32>
    %325 = vector.broadcast %324 : vector<1x64xf32> to vector<16x64xf32>
    %326 = arith.addf %323, %325 : vector<16x64xf32>
    %cst_183 = arith.constant 0.000000e+00 : f32
    %327 = vector.broadcast %cst_183 : f32 to vector<16x64xf32>
    %328 = arith.maximumf %326, %327 : vector<16x64xf32>
    %c0_184 = arith.constant 0 : index
    %c0_185 = arith.constant 0 : index
    %329 = vector.load %arg26[%c0_184, %c0_185] : memref<64x32xbf16, #tpu.memory_space<vmem>>, vector<64x32xbf16>
    %330 = arith.truncf %328 : vector<16x64xf32> to vector<16x64xbf16>
    %cst_186 = arith.constant dense<0.000000e+00> : vector<16x32xf32>
    %331 = tpu.matmul %330, %329, %cst_186 {dimension_numbers = #tpu.dot_dimension_numbers<[1], [0], [0], [1], [0, 0, 1, 1], [], []>} : vector<16x64xbf16>, vector<64x32xbf16>, vector<16x32xf32> -> vector<16x32xf32>
    %c0_187 = arith.constant 0 : index
    %c0_188 = arith.constant 0 : index
    %332 = vector.load %arg27[%c0_187, %c0_188] : memref<1x32xf32, #tpu.memory_space<vmem>>, vector<1x32xf32>
    %333 = vector.broadcast %332 : vector<1x32xf32> to vector<16x32xf32>
    %334 = arith.addf %331, %333 : vector<16x32xf32>
    %335 = arith.addf %320, %334 : vector<16x32xf32>
    %c0_189 = arith.constant 0 : index
    %c0_190 = arith.constant 0 : index
    %336 = vector.load %arg22[%c0_189, %c0_190] : memref<1x32xf32, #tpu.memory_space<vmem>>, vector<1x32xf32>
    %c0_191 = arith.constant 0 : index
    %c0_192 = arith.constant 0 : index
    %337 = vector.load %arg23[%c0_191, %c0_192] : memref<1x32xf32, #tpu.memory_space<vmem>>, vector<1x32xf32>
    %cst_193 = arith.constant dense<0.000000e+00> : vector<16xf32>
    %338 = vector.multi_reduction <add>, %335, %cst_193 [1] : vector<16x32xf32> to vector<16xf32>
    %339 = vector.shape_cast %338 : vector<16xf32> to vector<16x1xf32>
    %cst_194 = arith.constant 3.200000e+01 : f32
    %340 = vector.broadcast %cst_194 : f32 to vector<16x1xf32>
    %341 = arith.divf %339, %340 : vector<16x1xf32>
    %342 = vector.broadcast %341 : vector<16x1xf32> to vector<16x32xf32>
    %343 = arith.subf %335, %342 : vector<16x32xf32>
    %344 = arith.mulf %343, %343 : vector<16x32xf32>
    %cst_195 = arith.constant dense<0.000000e+00> : vector<16xf32>
    %345 = vector.multi_reduction <add>, %344, %cst_195 [1] : vector<16x32xf32> to vector<16xf32>
    %346 = vector.shape_cast %345 : vector<16xf32> to vector<16x1xf32>
    %cst_196 = arith.constant 3.200000e+01 : f32
    %347 = vector.broadcast %cst_196 : f32 to vector<16x1xf32>
    %348 = arith.divf %346, %347 : vector<16x1xf32>
    %cst_197 = arith.constant 9.99999974E-6 : f32
    %349 = vector.broadcast %cst_197 : f32 to vector<16x1xf32>
    %350 = arith.addf %348, %349 : vector<16x1xf32>
    %351 = math.rsqrt %350 : vector<16x1xf32>
    %352 = vector.broadcast %351 : vector<16x1xf32> to vector<16x32xf32>
    %353 = arith.mulf %343, %352 : vector<16x32xf32>
    %354 = vector.broadcast %336 : vector<1x32xf32> to vector<16x32xf32>
    %355 = arith.mulf %353, %354 : vector<16x32xf32>
    %356 = vector.broadcast %337 : vector<1x32xf32> to vector<16x32xf32>
    %357 = arith.addf %355, %356 : vector<16x32xf32>
    %c0_198 = arith.constant 0 : index
    %c0_199 = arith.constant 0 : index
    %358 = vector.load %arg28[%c0_198, %c0_199] : memref<16x32xf32, #tpu.memory_space<vmem>>, vector<16x32xf32>
    tpu.vector_store %arg28[%c0_198, %c0_199], %357 {strides = array<i32>} : memref<16x32xf32, #tpu.memory_space<vmem>>, vector<16x32xf32>,
    return
  }
}

</mosaic_0001>

<llo_original>
// kernel: _lambda_.1
$region0: #{_lambda_.1}
  #allocation0 [shape = 'u32[]', space=smem, size = 0x4, offset = 0x4, fixed_abs, tag = 'smem constant byte address 0x4 - core index']
  #allocation1 [shape = 'u32[72,128]{1,0:T(1,128)}', space=vmem, size = 0x9000, scoped, tag = 'internal scratch']
  #allocation2 [shape = 'f32[8,32]{1,0:T(8,128)}', space=vmem, size = 0x1000, scoped, tag = 'scratch operand']
  #allocation3 [shape = 'f32[16,32]{1,0:T(8,128)}', space=vmem, size = 0x2000, scoped, tag = 'scratch operand']
  #allocation4 [shape = 'f32[16,32]{1,0:T(8,128)}', space=vmem, size = 0x2000, scoped, tag = 'scratch operand']
  #allocation5 [shape = 'f32[16,32]{1,0:T(8,128)}', space=vmem, size = 0x2000, scoped, tag = 'scratch operand']
  #allocation6 [shape = 'f32[16,32]{1,0:T(8,128)}', space=vmem, size = 0x2000, scoped, tag = 'scratch operand']
  #allocation7 [shape = 'f32[16,32]{1,0:T(8,128)}', space=vmem, size = 0x2000, scoped, tag = 'scratch operand']
  #allocation8 [shape = 'f32[2,32]{1,0:T(2,128)}', space=vmem, size = 0x400, scoped, tag = 'scratch operand']
  #allocation9 [shape = 'f32[16,32]{1,0:T(8,128)}', space=vmem, size = 0x2000, scoped, tag = 'scratch operand']
  %s0 = inlined_call_operand.smem [shape: u32[30], index: -1, kind: input, shape index: {}]
  %s1 = sld [smem:[%s0]]
  %s2 = scalar_lea.smem %s0, 1
  %s3 = sld [smem:[%s2]]
  %s4 = scalar_lea.smem %s0, 2
  %s5 = sld [smem:[%s4]]
  %s6 = scalar_lea.smem %s0, 3
  %s7 = sld [smem:[%s6]]
  %s8 = scalar_lea.smem %s0, 4
  %s9 = sld [smem:[%s8]]
  %s10 = scalar_lea.smem %s0, 5
  %s11 = sld [smem:[%s10]]
  %s12 = scalar_lea.smem %s0, 6
  %s13 = sld [smem:[%s12]]
  %s14 = scalar_lea.smem %s0, 7
  %s15 = sld [smem:[%s14]]
  %s16 = scalar_lea.smem %s0, 8
  %s17 = sld [smem:[%s16]]
  %s18 = scalar_lea.smem %s0, 9
  %s19 = sld [smem:[%s18]]
  %s20 = scalar_lea.smem %s0, 10
  %s21 = sld [smem:[%s20]]
  %s22 = scalar_lea.smem %s0, 11
  %s23 = sld [smem:[%s22]]
  %s24 = scalar_lea.smem %s0, 12
  %s25 = sld [smem:[%s24]]
  %s26 = scalar_lea.smem %s0, 13
  %s27 = sld [smem:[%s26]]
  %s28 = scalar_lea.smem %s0, 14
  %s29 = sld [smem:[%s28]]
  %s30 = scalar_lea.smem %s0, 15
  %s31 = sld [smem:[%s30]]
  %s32 = scalar_lea.smem %s0, 16
  %s33 = sld [smem:[%s32]]
  %s34 = scalar_lea.smem %s0, 17
  %s35 = sld [smem:[%s34]]
  %s36 = scalar_lea.smem %s0, 18
  %s37 = sld [smem:[%s36]]
  %s38 = scalar_lea.smem %s0, 19
  %s39 = sld [smem:[%s38]]
  %s40 = scalar_lea.smem %s0, 20
  %s41 = sld [smem:[%s40]]
  %s42 = scalar_lea.smem %s0, 21
  %s43 = sld [smem:[%s42]]
  %s44 = scalar_lea.smem %s0, 22
  %s45 = sld [smem:[%s44]]
  %s46 = scalar_lea.smem %s0, 23
  %s47 = sld [smem:[%s46]]
  %s48 = scalar_lea.smem %s0, 24
  %s49 = sld [smem:[%s48]]
  %s50 = scalar_lea.smem %s0, 25
  %s51 = sld [smem:[%s50]]
  %s52 = scalar_lea.smem %s0, 26
  %s53 = sld [smem:[%s52]]
  %s54 = scalar_lea.smem %s0, 27
  %s55 = sld [smem:[%s54]]
  %s56 = scalar_lea.smem %s0, 28
  %s57 = sld [smem:[%s56]]
  %s58 = scalar_lea.smem %s0, 29
  %s59 = sld [smem:[%s58]]
  %60 = xla_tuple %s57, %s59
  %s61 = sld [smem:[#allocation0]]
  $region185: #{_lambda_.1} parent=0
    _
  %s63 = ssub.s32 1, %s61
  %s64 = scalar_select 0, %s63, %s61
  $region1: #{_lambda_.1} parent=0
    #allocation10 [shape = 'u8[8192]{0}', space=vmem, size = 0x2000, scoped, tag = 'input window, operand 0, single buffered']
    #allocation11 [shape = 's32[1]{0}', space=sflag, size = 0x4, scoped, tag = 'scoped memory for _lambda_.1']
    #allocation12 [shape = 's32[1]{0}', space=sflag, size = 0x4, scoped, tag = 'scoped memory for _lambda_.1']
    #allocation13 [shape = 'u8[8192]{0}', space=vmem, size = 0x2000, scoped, tag = 'input window, operand 1, single buffered']
    #allocation14 [shape = 's32[1]{0}', space=sflag, size = 0x4, scoped, tag = 'scoped memory for _lambda_.1']
    #allocation15 [shape = 'u8[8192]{0}', space=vmem, size = 0x2000, scoped, tag = 'input window, operand 2, single buffered']
    #allocation16 [shape = 'u8[8192]{0}', space=vmem, size = 0x2000, scoped, tag = 'input window, operand 3, single buffered']
    #allocation17 [shape = 's32[1]{0}', space=sflag, size = 0x4, scoped, tag = 'scoped memory for _lambda_.1']
    #allocation18 [shape = 'u8[8192]{0}', space=vmem, size = 0x2000, scoped, tag = 'input window, operand 6, single buffered']
    #allocation19 [shape = 'u8[8192]{0}', space=vmem, size = 0x2000, scoped, tag = 'input window, operand 8, single buffered']
    #allocation20 [shape = 's32[1]{0}', space=sflag, size = 0x4, scoped, tag = 'scoped memory for _lambda_.1']
    #allocation21 [shape = 'u8[8192]{0}', space=vmem, size = 0x2000, scoped, tag = 'input window, operand 10, single buffered']
    #allocation22 [shape = 'u8[8192]{0}', space=vmem, size = 0x2000, scoped, tag = 'input window, operand 12, single buffered']
    #allocation23 [shape = 's32[1]{0}', space=sflag, size = 0x4, scoped, tag = 'scoped memory for _lambda_.1']
    #allocation24 [shape = 'u8[8192]{0}', space=vmem, size = 0x2000, scoped, tag = 'input window, operand 14, single buffered']
    #allocation25 [shape = 'u8[8192]{0}', space=vmem, size = 0x2000, scoped, tag = 'input window, operand 16, single buffered']
    #allocation26 [shape = 's32[1]{0}', space=sflag, size = 0x4, scoped, tag = 'scoped memory for _lambda_.1']
    #allocation27 [shape = 'u8[8192]{0}', space=vmem, size = 0x2000, scoped, tag = 'input window, operand 24, single buffered']
    #allocation28 [shape = 'u8[16384]{0}', space=vmem, size = 0x4000, scoped, tag = 'input window, operand 26, single buffered']
    #allocation29 [shape = 's32[1]{0}', space=sflag, size = 0x4, scoped, tag = 'scoped memory for _lambda_.1']
    #allocation30 [shape = 'u8[8192]{0}', space=vmem, size = 0x2000, scoped, tag = 'output window, operand 0, single buffered']
    %65 = vsyncpa [#allocation11], 0
    %66 = vsyncpa [#allocation14], 0
    %67 = vsyncpa [#allocation17], 0
    %68 = vsyncpa [#allocation20], 0
    %69 = vsyncpa [#allocation23], 0
    %70 = vsyncpa [#allocation26], 0
    %71 = vsyncpa [#allocation29], 0
    %72 = vsyncpa [#allocation12], 0
    // Predicated region
    $region2: #{_lambda_.1} parent=1 // pred_check
      _
    $region3: #{_lambda_.1} parent=1 // pred_check_branch
      %74 = sbr.rel (0) target = $region5
    $region4: #{_lambda_.1} parent=1 // pred_region
      %76 = vsyncadd [#allocation11], 0
      %s77 = sshll.u32 %s1, 4
      %s78 = int_to_ptr.hbm [resolvable:$true] %s77
      %s79 = sshll.u32 [#allocation10], 4
      %s80 = int_to_ptr.vmem [resolvable:$true] %s79
      %85 = dma.hbm_to_vmem [thread:$0]  %s78, 256, %s80, [#allocation11], 128, 128, 8
    $region5: #{_lambda_.1} parent=1 // pred_fallthru
      _
    // Predicated region
    $region6: #{_lambda_.1} parent=1 // pred_check
      _
    $region7: #{_lambda_.1} parent=1 // pred_check_branch
      %87 = sbr.rel (0) target = $region9
    $region8: #{_lambda_.1} parent=1 // pred_region
      %89 = vsyncadd [#allocation14], 0
      %s90 = sshll.u32 %s3, 4
      %s91 = int_to_ptr.hbm [resolvable:$true] %s90
      %s92 = sshll.u32 [#allocation13], 4
      %s93 = int_to_ptr.vmem [resolvable:$true] %s92
      %98 = dma.hbm_to_vmem [thread:$0]  %s91, 256, %s93, [#allocation14], 128, 128, 8
    $region9: #{_lambda_.1} parent=1 // pred_fallthru
      _
    // Predicated region
    $region10: #{_lambda_.1} parent=1 // pred_check
      _
    $region11: #{_lambda_.1} parent=1 // pred_check_branch
      %100 = sbr.rel (0) target = $region13
    $region12: #{_lambda_.1} parent=1 // pred_region
      %102 = vsyncadd [#allocation14], 0
      %s103 = sshll.u32 %s5, 4
      %s104 = int_to_ptr.hbm [resolvable:$true] %s103
      %s105 = sshll.u32 [#allocation15], 4
      %s106 = int_to_ptr.vmem [resolvable:$true] %s105
      %111 = dma.hbm_to_vmem [thread:$0]  %s104, 256, %s106, [#allocation14], 128, 128, 8
    $region13: #{_lambda_.1} parent=1 // pred_fallthru
      _
    // Predicated region
    $region14: #{_lambda_.1} parent=1 // pred_check
      _
    $region15: #{_lambda_.1} parent=1 // pred_check_branch
      %113 = sbr.rel (0) target = $region17
    $region16: #{_lambda_.1} parent=1 // pred_region
      %115 = vsyncadd [#allocation17], 0
      %s116 = sshll.u32 %s7, 4
      %s117 = int_to_ptr.hbm [resolvable:$true] %s116
      %s118 = sshll.u32 [#allocation16], 4
      %s119 = int_to_ptr.vmem [resolvable:$true] %s118
      %124 = dma.hbm_to_vmem [thread:$0]  %s117, 256, %s119, [#allocation17], 128, 128, 8
    $region17: #{_lambda_.1} parent=1 // pred_fallthru
      _
    // Predicated region
    $region18: #{_lambda_.1} parent=1 // pred_check
      _
    $region19: #{_lambda_.1} parent=1 // pred_check_branch
      %126 = sbr.rel (0) target = $region21
    $region20: #{_lambda_.1} parent=1 // pred_region
      _
    $region21: #{_lambda_.1} parent=1 // pred_fallthru
      _
    // Predicated region
    $region22: #{_lambda_.1} parent=1 // pred_check
      _
    $region23: #{_lambda_.1} parent=1 // pred_check_branch
      %128 = sbr.rel (0) target = $region25
    $region24: #{_lambda_.1} parent=1 // pred_region
      _
    $region25: #{_lambda_.1} parent=1 // pred_fallthru
      _
    // Predicated region
    $region26: #{_lambda_.1} parent=1 // pred_check
      _
    $region27: #{_lambda_.1} parent=1 // pred_check_branch
      %130 = sbr.rel (0) target = $region29
    $region28: #{_lambda_.1} parent=1 // pred_region
      %132 = vsyncadd [#allocation17], 0
      %s133 = sshll.u32 %s13, 4
      %s134 = int_to_ptr.hbm [resolvable:$true] %s133
      %s135 = sshll.u32 [#allocation18], 4
      %s136 = int_to_ptr.vmem [resolvable:$true] %s135
      %141 = dma.hbm_to_vmem [thread:$0]  %s134, 256, %s136, [#allocation17], 64, 64, 4
    $region29: #{_lambda_.1} parent=1 // pred_fallthru
      _
    // Predicated region
    $region30: #{_lambda_.1} parent=1 // pred_check
      _
    $region31: #{_lambda_.1} parent=1 // pred_check_branch
      %143 = sbr.rel (0) target = $region33
    $region32: #{_lambda_.1} parent=1 // pred_region
      _
    $region33: #{_lambda_.1} parent=1 // pred_fallthru
      _
    // Predicated region
    $region34: #{_lambda_.1} parent=1 // pred_check
      _
    $region35: #{_lambda_.1} parent=1 // pred_check_branch
      %145 = sbr.rel (0) target = $region37
    $region36: #{_lambda_.1} parent=1 // pred_region
      %147 = vsyncadd [#allocation20], 0
      %s148 = sshll.u32 %s17, 4
      %s149 = int_to_ptr.hbm [resolvable:$true] %s148
      %s150 = sshll.u32 [#allocation19], 4
      %s151 = int_to_ptr.vmem [resolvable:$true] %s150
      %156 = dma.hbm_to_vmem [thread:$0]  %s149, 256, %s151, [#allocation20], 64, 64, 4
    $region37: #{_lambda_.1} parent=1 // pred_fallthru
      _
    // Predicated region
    $region38: #{_lambda_.1} parent=1 // pred_check
      _
    $region39: #{_lambda_.1} parent=1 // pred_check_branch
      %158 = sbr.rel (0) target = $region41
    $region40: #{_lambda_.1} parent=1 // pred_region
      _
    $region41: #{_lambda_.1} parent=1 // pred_fallthru
      _
    // Predicated region
    $region42: #{_lambda_.1} parent=1 // pred_check
      _
    $region43: #{_lambda_.1} parent=1 // pred_check_branch
      %160 = sbr.rel (0) target = $region45
    $region44: #{_lambda_.1} parent=1 // pred_region
      %162 = vsyncadd [#allocation20], 0
      %s163 = sshll.u32 %s21, 4
      %s164 = int_to_ptr.hbm [resolvable:$true] %s163
      %s165 = sshll.u32 [#allocation21], 4
      %s166 = int_to_ptr.vmem [resolvable:$true] %s165
      %171 = dma.hbm_to_vmem [thread:$0]  %s164, 256, %s166, [#allocation20], 64, 64, 4
    $region45: #{_lambda_.1} parent=1 // pred_fallthru
      _
    // Predicated region
    $region46: #{_lambda_.1} parent=1 // pred_check
      _
    $region47: #{_lambda_.1} parent=1 // pred_check_branch
      %173 = sbr.rel (0) target = $region49
    $region48: #{_lambda_.1} parent=1 // pred_region
      _
    $region49: #{_lambda_.1} parent=1 // pred_fallthru
      _
    // Predicated region
    $region50: #{_lambda_.1} parent=1 // pred_check
      _
    $region51: #{_lambda_.1} parent=1 // pred_check_branch
      %175 = sbr.rel (0) target = $region53
    $region52: #{_lambda_.1} parent=1 // pred_region
      %177 = vsyncadd [#allocation23], 0
      %s178 = sshll.u32 %s25, 4
      %s179 = int_to_ptr.hbm [resolvable:$true] %s178
      %s180 = sshll.u32 [#allocation22], 4
      %s181 = int_to_ptr.vmem [resolvable:$true] %s180
      %186 = dma.hbm_to_vmem [thread:$0]  %s179, 256, %s181, [#allocation23], 64, 64, 4
    $region53: #{_lambda_.1} parent=1 // pred_fallthru
      _
    // Predicated region
    $region54: #{_lambda_.1} parent=1 // pred_check
      _
    $region55: #{_lambda_.1} parent=1 // pred_check_branch
      %188 = sbr.rel (0) target = $region57
    $region56: #{_lambda_.1} parent=1 // pred_region
      _
    $region57: #{_lambda_.1} parent=1 // pred_fallthru
      _
    // Predicated region
    $region58: #{_lambda_.1} parent=1 // pred_check
      _
    $region59: #{_lambda_.1} parent=1 // pred_check_branch
      %190 = sbr.rel (0) target = $region61
    $region60: #{_lambda_.1} parent=1 // pred_region
      %192 = vsyncadd [#allocation23], 0
      %s193 = sshll.u32 %s29, 4
      %s194 = int_to_ptr.hbm [resolvable:$true] %s193
      %s195 = sshll.u32 [#allocation24], 4
      %s196 = int_to_ptr.vmem [resolvable:$true] %s195
      %201 = dma.hbm_to_vmem [thread:$0]  %s194, 256, %s196, [#allocation23], 64, 64, 4
    $region61: #{_lambda_.1} parent=1 // pred_fallthru
      _
    // Predicated region
    $region62: #{_lambda_.1} parent=1 // pred_check
      _
    $region63: #{_lambda_.1} parent=1 // pred_check_branch
      %203 = sbr.rel (0) target = $region65
    $region64: #{_lambda_.1} parent=1 // pred_region
      _
    $region65: #{_lambda_.1} parent=1 // pred_fallthru
      _
    // Predicated region
    $region66: #{_lambda_.1} parent=1 // pred_check
      _
    $region67: #{_lambda_.1} parent=1 // pred_check_branch
      %205 = sbr.rel (0) target = $region69
    $region68: #{_lambda_.1} parent=1 // pred_region
      %207 = vsyncadd [#allocation26], 0
      %s208 = sshll.u32 %s33, 4
      %s209 = int_to_ptr.hbm [resolvable:$true] %s208
      %s210 = sshll.u32 [#allocation25], 4
      %s211 = int_to_ptr.vmem [resolvable:$true] %s210
      %216 = dma.hbm_to_vmem [thread:$0]  %s209, 256, %s211, [#allocation26], 64, 64, 4
    $region69: #{_lambda_.1} parent=1 // pred_fallthru
      _
    // Predicated region
    $region70: #{_lambda_.1} parent=1 // pred_check
      _
    $region71: #{_lambda_.1} parent=1 // pred_check_branch
      %218 = sbr.rel (0) target = $region73
    $region72: #{_lambda_.1} parent=1 // pred_region
      _
    $region73: #{_lambda_.1} parent=1 // pred_fallthru
      _
    // Predicated region
    $region74: #{_lambda_.1} parent=1 // pred_check
      _
    $region75: #{_lambda_.1} parent=1 // pred_check_branch
      %220 = sbr.rel (0) target = $region77
    $region76: #{_lambda_.1} parent=1 // pred_region
      _
    $region77: #{_lambda_.1} parent=1 // pred_fallthru
      _
    // Predicated region
    $region78: #{_lambda_.1} parent=1 // pred_check
      _
    $region79: #{_lambda_.1} parent=1 // pred_check_branch
      %222 = sbr.rel (0) target = $region81
    $region80: #{_lambda_.1} parent=1 // pred_region
      _
    $region81: #{_lambda_.1} parent=1 // pred_fallthru
      _
    // Predicated region
    $region82: #{_lambda_.1} parent=1 // pred_check
      _
    $region83: #{_lambda_.1} parent=1 // pred_check_branch
      %224 = sbr.rel (0) target = $region85
    $region84: #{_lambda_.1} parent=1 // pred_region
      _
    $region85: #{_lambda_.1} parent=1 // pred_fallthru
      _
    // Predicated region
    $region86: #{_lambda_.1} parent=1 // pred_check
      _
    $region87: #{_lambda_.1} parent=1 // pred_check_branch
      %226 = sbr.rel (0) target = $region89
    $region88: #{_lambda_.1} parent=1 // pred_region
      _
    $region89: #{_lambda_.1} parent=1 // pred_fallthru
      _
    // Predicated region
    $region90: #{_lambda_.1} parent=1 // pred_check
      _
    $region91: #{_lambda_.1} parent=1 // pred_check_branch
      %228 = sbr.rel (0) target = $region93
    $region92: #{_lambda_.1} parent=1 // pred_region
      _
    $region93: #{_lambda_.1} parent=1 // pred_fallthru
      _
    // Predicated region
    $region94: #{_lambda_.1} parent=1 // pred_check
      _
    $region95: #{_lambda_.1} parent=1 // pred_check_branch
      %230 = sbr.rel (0) target = $region97
    $region96: #{_lambda_.1} parent=1 // pred_region
      _
    $region97: #{_lambda_.1} parent=1 // pred_fallthru
      _
    // Predicated region
    $region98: #{_lambda_.1} parent=1 // pred_check
      _
    $region99: #{_lambda_.1} parent=1 // pred_check_branch
      %232 = sbr.rel (0) target = $region101
    $region100: #{_lambda_.1} parent=1 // pred_region
      %234 = vsyncadd [#allocation26], 0
      %s235 = sshll.u32 %s49, 4
      %s236 = int_to_ptr.hbm [resolvable:$true] %s235
      %s237 = sshll.u32 [#allocation27], 4
      %s238 = int_to_ptr.vmem [resolvable:$true] %s237
      %243 = dma.hbm_to_vmem [thread:$0]  %s236, 256, %s238, [#allocation26], 64, 64, 4
    $region101: #{_lambda_.1} parent=1 // pred_fallthru
      _
    // Predicated region
    $region102: #{_lambda_.1} parent=1 // pred_check
      _
    $region103: #{_lambda_.1} parent=1 // pred_check_branch
      %245 = sbr.rel (0) target = $region105
    $region104: #{_lambda_.1} parent=1 // pred_region
      _
    $region105: #{_lambda_.1} parent=1 // pred_fallthru
      _
    // Predicated region
    $region106: #{_lambda_.1} parent=1 // pred_check
      _
    $region107: #{_lambda_.1} parent=1 // pred_check_branch
      %247 = sbr.rel (0) target = $region109
    $region108: #{_lambda_.1} parent=1 // pred_region
      %249 = vsyncadd [#allocation29], 0
      %s250 = sshll.u32 %s53, 4
      %s251 = int_to_ptr.hbm [resolvable:$true] %s250
      %s252 = sshll.u32 [#allocation28], 4
      %s253 = int_to_ptr.vmem [resolvable:$true] %s252
      %258 = dma.hbm_to_vmem [thread:$0]  %s251, 512, %s253, [#allocation29], 64, 64, 4
    $region109: #{_lambda_.1} parent=1 // pred_fallthru
      _
    // Predicated region
    $region110: #{_lambda_.1} parent=1 // pred_check
      _
    $region111: #{_lambda_.1} parent=1 // pred_check_branch
      %260 = sbr.rel (0) target = $region113
    $region112: #{_lambda_.1} parent=1 // pred_region
      _
    $region113: #{_lambda_.1} parent=1 // pred_fallthru
      _
    // Predicated region
    $region114: #{_lambda_.1} parent=1 // pred_check
      _
    $region115: #{_lambda_.1} parent=1 // pred_check_branch
      %262 = sbr.rel (0) target = $region117
    $region116: #{_lambda_.1} parent=1 // pred_region
      %264 = dma.done [#allocation11], 256
    $region117: #{_lambda_.1} parent=1 // pred_fallthru
      _
    // Predicated region
    $region118: #{_lambda_.1} parent=1 // pred_check
      _
    $region119: #{_lambda_.1} parent=1 // pred_check_branch
      %266 = sbr.rel (0) target = $region121
    $region120: #{_lambda_.1} parent=1 // pred_region
      %268 = dma.done [#allocation14], 256
    $region121: #{_lambda_.1} parent=1 // pred_fallthru
      _
    // Predicated region
    $region122: #{_lambda_.1} parent=1 // pred_check
      _
    $region123: #{_lambda_.1} parent=1 // pred_check_branch
      %270 = sbr.rel (0) target = $region125
    $region124: #{_lambda_.1} parent=1 // pred_region
      %272 = dma.done [#allocation14], 256
    $region125: #{_lambda_.1} parent=1 // pred_fallthru
      _
    // Predicated region
    $region126: #{_lambda_.1} parent=1 // pred_check
      _
    $region127: #{_lambda_.1} parent=1 // pred_check_branch
      %274 = sbr.rel (0) target = $region129
    $region128: #{_lambda_.1} parent=1 // pred_region
      %276 = dma.done [#allocation17], 256
    $region129: #{_lambda_.1} parent=1 // pred_fallthru
      _
    // Predicated region
    $region130: #{_lambda_.1} parent=1 // pred_check
      _
    $region131: #{_lambda_.1} parent=1 // pred_check_branch
      %278 = sbr.rel (0) target = $region133
    $region132: #{_lambda_.1} parent=1 // pred_region
      %280 = dma.done [#allocation17], 256
    $region133: #{_lambda_.1} parent=1 // pred_fallthru
      _
    // Predicated region
    $region134: #{_lambda_.1} parent=1 // pred_check
      _
    $region135: #{_lambda_.1} parent=1 // pred_check_branch
      %282 = sbr.rel (0) target = $region137
    $region136: #{_lambda_.1} parent=1 // pred_region
      %284 = dma.done [#allocation20], 256
    $region137: #{_lambda_.1} parent=1 // pred_fallthru
      _
    // Predicated region
    $region138: #{_lambda_.1} parent=1 // pred_check
      _
    $region139: #{_lambda_.1} parent=1 // pred_check_branch
      %286 = sbr.rel (0) target = $region141
    $region140: #{_lambda_.1} parent=1 // pred_region
      %288 = dma.done [#allocation20], 256
    $region141: #{_lambda_.1} parent=1 // pred_fallthru
      _
    // Predicated region
    $region142: #{_lambda_.1} parent=1 // pred_check
      _
    $region143: #{_lambda_.1} parent=1 // pred_check_branch
      %290 = sbr.rel (0) target = $region145
    $region144: #{_lambda_.1} parent=1 // pred_region
      %292 = dma.done [#allocation23], 256
    $region145: #{_lambda_.1} parent=1 // pred_fallthru
      _
    // Predicated region
    $region146: #{_lambda_.1} parent=1 // pred_check
      _
    $region147: #{_lambda_.1} parent=1 // pred_check_branch
      %294 = sbr.rel (0) target = $region149
    $region148: #{_lambda_.1} parent=1 // pred_region
      %296 = dma.done [#allocation23], 256
    $region149: #{_lambda_.1} parent=1 // pred_fallthru
      _
    // Predicated region
    $region150: #{_lambda_.1} parent=1 // pred_check
      _
    $region151: #{_lambda_.1} parent=1 // pred_check_branch
      %298 = sbr.rel (0) target = $region153
    $region152: #{_lambda_.1} parent=1 // pred_region
      %300 = dma.done [#allocation26], 256
    $region153: #{_lambda_.1} parent=1 // pred_fallthru
      _
    // Predicated region
    $region154: #{_lambda_.1} parent=1 // pred_check
      _
    $region155: #{_lambda_.1} parent=1 // pred_check_branch
      %302 = sbr.rel (0) target = $region157
    $region156: #{_lambda_.1} parent=1 // pred_region
      %304 = dma.done [#allocation26], 256
    $region157: #{_lambda_.1} parent=1 // pred_fallthru
      _
    // Predicated region
    $region158: #{_lambda_.1} parent=1 // pred_check
      _
    $region159: #{_lambda_.1} parent=1 // pred_check_branch
      %306 = sbr.rel (0) target = $region161
    $region160: #{_lambda_.1} parent=1 // pred_region
      %308 = dma.done [#allocation29], 512
    $region161: #{_lambda_.1} parent=1 // pred_fallthru
      _
    %v310 = vld [vmem:[#allocation10] ss:$2 sm:$0xff]
    %v311 = vld [vmem:[#allocation13] ss:$2 sm:$0xff]
    %v312 = vadd.f32 %v310, %v311
    %v313 = vld [vmem:[%s9] sm:$0xf]
    %v314 = vld [vmem:[%s9 + $0x4] sm:$0xf]
    %v315 = vld [vmem:[%s9 + $0x8] sm:$0xf]
    %v316 = vld [vmem:[%s9 + $0xc] sm:$0xf]
    %v317 = vpack.c.bf16 %v312, %v312
    %v318 = vld [vmem:[%s11] sm:$0x1]
    %v320 = vperm.slane %v318, 0
    %v326 = vunpack.c.l.b16 %v313
    %v327 = vunpack.c.l.b16 %v314
    %v328 = vunpack.c.l.b16 %v315
    %v329 = vunpack.c.l.b16 %v316
    %v330 = vpack.c.b16 %v327, %v326
    %v331 = vpack.c.b16 %v329, %v328
    %vm334 = vcmask 261120
    %v336 = vsel %vm334, %v317, 0
    %338 = vmatpush.bf16.msra.mxu0 0
    %339 = vmatpush.bf16.msra.mxu0 0
    %340 = vmatpush.bf16.msra.mxu0 0
    %341 = vmatpush.bf16.msra.mxu0 0
    %342 = vmatpush.bf16.msra.mxu0 0
    %343 = vmatpush.bf16.msra.mxu0 0
    %344 = vmatpush.bf16.msra.mxu0 %v331
    %345 = vmatpush.bf16.msra.mxu0 %v330
    %346 = vmatmul.bf16.gmra.mxu0 %v336
    %v347 = vpop.f32.mrf.mxu0
    %v348 = vadd.f32 %v320, %v347
    %v349 = vpop.f32.mrf.mxu0
    %350 = vdwg.mxu0
    %v351 = vld [vmem:[#allocation18] sm:$0xf]
    %v352 = vld [vmem:[#allocation18 + $0x4] sm:$0xf]
    %v353 = vld [vmem:[#allocation18 + $0x8] sm:$0xf]
    %v354 = vld [vmem:[#allocation18 + $0xc] sm:$0xf]
    %v355 = vpack.c.bf16 %v310, %v310
    %v356 = vld [vmem:[%s15] sm:$0x1]
    %v358 = vperm.slane %v356, 0
    %v364 = vunpack.c.l.b16 %v351
    %v365 = vunpack.c.l.b16 %v352
    %v366 = vunpack.c.l.b16 %v353
    %v367 = vunpack.c.l.b16 %v354
    %v368 = vpack.c.b16 %v365, %v364
    %v369 = vpack.c.b16 %v367, %v366
    %v373 = vsel %vm334, %v355, 0
    %375 = vmatpush.bf16.msra.mxu0 0
    %376 = vmatpush.bf16.msra.mxu0 0
    %377 = vmatpush.bf16.msra.mxu0 0
    %378 = vmatpush.bf16.msra.mxu0 0
    %379 = vmatpush.bf16.msra.mxu0 0
    %380 = vmatpush.bf16.msra.mxu0 0
    %381 = vmatpush.bf16.msra.mxu0 %v369
    %382 = vmatpush.bf16.msra.mxu0 %v368
    %383 = vmatmul.bf16.gmra.mxu0 %v373
    %v384 = vpop.f32.mrf.mxu0
    %v385 = vadd.f32 %v358, %v384
    %v386 = vpop.f32.mrf.mxu0
    %387 = vdwg.mxu0
    %v388 = vpack.c.bf16 %v348, %v348
    %390 = vrot.lane.b32.xlu0 %v388, 96
    %v391 = vpop.permute.xlu0 %390
    %vm392 = vcmask 64512
    %v394 = vsel %vm392, %v388, 0
    %v397 = vsel %vm392, %v391, 0
    %399 = vmatpush.bf16.xpose.msra.mxu0 0
    %400 = vmatpush.bf16.xpose.msra.mxu0 0
    %401 = vmatpush.bf16.xpose.msra.mxu0 0
    %402 = vmatpush.bf16.xpose.msra.mxu0 0
    %403 = vmatpush.bf16.xpose.msra.mxu0 0
    %404 = vmatpush.bf16.xpose.msra.mxu0 0
    %405 = vmatpush.bf16.xpose.msra.mxu0 0
    %406 = vmatpush.bf16.xpose.msra.mxu0 %v397
    %407 = vmatmul.bf16.gmra.mxu0 %v394
    %v408 = vpop.f32.mrf.mxu0
    %v409 = vadd.f32 0.0, %v408
    %v410 = vpop.f32.mrf.mxu0
    %411 = vdwg.mxu0
    %v412 = vmul.f32 %v409, 0.35355338
    %v413 = vsel %vm392, %v412, -inf
    %414 = vmax.xlane.f32.xlu0 %v413
    %v415 = vpop.xlane.xlu0 %414
    %v416 = vsub.f32 %v412, %v415
    %v417 = vmul.f32 %v416, 1.442695
    %v418 = vpow.pop %v417
    %v419 = vsel %vm392, %v418, 0.0
    %420 = vadd.xlane.f32.xlu0 %v419
    %v421 = vpop.xlane.xlu0 %420
    %v422 = vrcp.pop %v421
    %v423 = vpack.c.bf16 %v418, %v418
    %v424 = vpack.c.bf16 %v385, %v385
    %v426 = vsel %vm392, %v423, 0
    %vm428 = vcmask 1043456
    %v430 = vsel %vm428, %v424, 0
    %432 = vmatpush.bf16.msra.mxu0 0
    %433 = vmatpush.bf16.msra.mxu0 0
    %434 = vmatpush.bf16.msra.mxu0 0
    %435 = vmatpush.bf16.msra.mxu0 0
    %436 = vmatpush.bf16.msra.mxu0 0
    %437 = vmatpush.bf16.msra.mxu0 0
    %438 = vmatpush.bf16.msra.mxu0 0
    %439 = vmatpush.bf16.msra.mxu0 %v430
    %440 = vmatmul.bf16.gmra.mxu0 %v426
    %v441 = vpop.f32.mrf.mxu0
    %v442 = vadd.f32 0.0, %v441
    %v443 = vpop.f32.mrf.mxu0
    %444 = vdwg.mxu0
    %v445 = vmul.f32 %v442, %v422
    %446 = vst.msk [vmem:[#allocation2] sm:$0xff] %vm392, %v445
    %447 = vrot.lane.b32.xlu0 %v388, 120
    %v448 = vpop.permute.xlu0 %447
    %449 = vrot.lane.b32.xlu0 %v388, 88
    %v450 = vpop.permute.xlu0 %449
    %v452 = vsel %vm392, %v448, 0
    %v455 = vsel %vm392, %v450, 0
    %457 = vmatpush.bf16.xpose.msra.mxu0 0
    %458 = vmatpush.bf16.xpose.msra.mxu0 0
    %459 = vmatpush.bf16.xpose.msra.mxu0 0
    %460 = vmatpush.bf16.xpose.msra.mxu0 0
    %461 = vmatpush.bf16.xpose.msra.mxu0 0
    %462 = vmatpush.bf16.xpose.msra.mxu0 0
    %463 = vmatpush.bf16.xpose.msra.mxu0 0
    %464 = vmatpush.bf16.xpose.msra.mxu0 %v455
    %465 = vmatmul.bf16.gmra.mxu0 %v452
    %v466 = vpop.f32.mrf.mxu0
    %v467 = vadd.f32 0.0, %v466
    %v468 = vpop.f32.mrf.mxu0
    %469 = vdwg.mxu0
    %v470 = vmul.f32 %v467, 0.35355338
    %v471 = vsel %vm392, %v470, -inf
    %472 = vmax.xlane.f32.xlu0 %v471
    %v473 = vpop.xlane.xlu0 %472
    %v474 = vsub.f32 %v470, %v473
    %v475 = vmul.f32 %v474, 1.442695
    %v476 = vpow.pop %v475
    %v477 = vsel %vm392, %v476, 0.0
    %478 = vadd.xlane.f32.xlu0 %v477
    %v479 = vpop.xlane.xlu0 %478
    %v480 = vrcp.pop %v479
    %v481 = vpack.c.bf16 %v476, %v476
    %483 = vrot.lane.b32.xlu0 %v424, 120
    %v484 = vpop.permute.xlu0 %483
    %v486 = vsel %vm392, %v481, 0
    %v489 = vsel %vm428, %v484, 0
    %491 = vmatpush.bf16.msra.mxu0 0
    %492 = vmatpush.bf16.msra.mxu0 0
    %493 = vmatpush.bf16.msra.mxu0 0
    %494 = vmatpush.bf16.msra.mxu0 0
    %495 = vmatpush.bf16.msra.mxu0 0
    %496 = vmatpush.bf16.msra.mxu0 0
    %497 = vmatpush.bf16.msra.mxu0 0
    %498 = vmatpush.bf16.msra.mxu0 %v489
    %499 = vmatmul.bf16.gmra.mxu0 %v486
    %v500 = vpop.f32.mrf.mxu0
    %v501 = vadd.f32 0.0, %v500
    %v502 = vpop.f32.mrf.mxu0
    %503 = vdwg.mxu0
    %v504 = vmul.f32 %v501, %v480
    %506 = vrot.lane.b32.xlu0 %v504, 8
    %v507 = vpop.permute.xlu0 %506
    %vm509 = vcmask 130112
    %510 = vst.msk [vmem:[#allocation2] sm:$0xff] %vm509, %v507
    %511 = vrot.lane.b32.xlu0 %v388, 112
    %v512 = vpop.permute.xlu0 %511
    %513 = vrot.lane.b32.xlu0 %v388, 80
    %v514 = vpop.permute.xlu0 %513
    %v516 = vsel %vm392, %v512, 0
    %v519 = vsel %vm392, %v514, 0
    %521 = vmatpush.bf16.xpose.msra.mxu0 0
    %522 = vmatpush.bf16.xpose.msra.mxu0 0
    %523 = vmatpush.bf16.xpose.msra.mxu0 0
    %524 = vmatpush.bf16.xpose.msra.mxu0 0
    %525 = vmatpush.bf16.xpose.msra.mxu0 0
    %526 = vmatpush.bf16.xpose.msra.mxu0 0
    %527 = vmatpush.bf16.xpose.msra.mxu0 0
    %528 = vmatpush.bf16.xpose.msra.mxu0 %v519
    %529 = vmatmul.bf16.gmra.mxu0 %v516
    %v530 = vpop.f32.mrf.mxu0
    %v531 = vadd.f32 0.0, %v530
    %v532 = vpop.f32.mrf.mxu0
    %533 = vdwg.mxu0
    %v534 = vmul.f32 %v531, 0.35355338
    %v535 = vsel %vm392, %v534, -inf
    %536 = vmax.xlane.f32.xlu0 %v535
    %v537 = vpop.xlane.xlu0 %536
    %v538 = vsub.f32 %v534, %v537
    %v539 = vmul.f32 %v538, 1.442695
    %v540 = vpow.pop %v539
    %v541 = vsel %vm392, %v540, 0.0
    %542 = vadd.xlane.f32.xlu0 %v541
    %v543 = vpop.xlane.xlu0 %542
    %v544 = vrcp.pop %v543
    %v545 = vpack.c.bf16 %v540, %v540
    %546 = vrot.lane.b32.xlu0 %v424, 112
    %v547 = vpop.permute.xlu0 %546
    %v549 = vsel %vm392, %v545, 0
    %v552 = vsel %vm428, %v547, 0
    %554 = vmatpush.bf16.msra.mxu0 0
    %555 = vmatpush.bf16.msra.mxu0 0
    %556 = vmatpush.bf16.msra.mxu0 0
    %557 = vmatpush.bf16.msra.mxu0 0
    %558 = vmatpush.bf16.msra.mxu0 0
    %559 = vmatpush.bf16.msra.mxu0 0
    %560 = vmatpush.bf16.msra.mxu0 0
    %561 = vmatpush.bf16.msra.mxu0 %v552
    %562 = vmatmul.bf16.gmra.mxu0 %v549
    %v563 = vpop.f32.mrf.mxu0
    %v564 = vadd.f32 0.0, %v563
    %v565 = vpop.f32.mrf.mxu0
    %566 = vdwg.mxu0
    %v567 = vmul.f32 %v564, %v544
    %569 = vrot.lane.b32.xlu0 %v567, 16
    %v570 = vpop.permute.xlu0 %569
    %vm572 = vcmask 195712
    %573 = vst.msk [vmem:[#allocation2] sm:$0xff] %vm572, %v570
    %574 = vrot.lane.b32.xlu0 %v388, 104
    %v575 = vpop.permute.xlu0 %574
    %576 = vrot.lane.b32.xlu0 %v388, 72
    %v577 = vpop.permute.xlu0 %576
    %v579 = vsel %vm392, %v575, 0
    %v582 = vsel %vm392, %v577, 0
    %584 = vmatpush.bf16.xpose.msra.mxu0 0
    %585 = vmatpush.bf16.xpose.msra.mxu0 0
    %586 = vmatpush.bf16.xpose.msra.mxu0 0
    %587 = vmatpush.bf16.xpose.msra.mxu0 0
    %588 = vmatpush.bf16.xpose.msra.mxu0 0
    %589 = vmatpush.bf16.xpose.msra.mxu0 0
    %590 = vmatpush.bf16.xpose.msra.mxu0 0
    %591 = vmatpush.bf16.xpose.msra.mxu0 %v582
    %592 = vmatmul.bf16.gmra.mxu0 %v579
    %v593 = vpop.f32.mrf.mxu0
    %v594 = vadd.f32 0.0, %v593
    %v595 = vpop.f32.mrf.mxu0
    %596 = vdwg.mxu0
    %v597 = vmul.f32 %v594, 0.35355338
    %v598 = vsel %vm392, %v597, -inf
    %599 = vmax.xlane.f32.xlu0 %v598
    %v600 = vpop.xlane.xlu0 %599
    %v601 = vsub.f32 %v597, %v600
    %v602 = vmul.f32 %v601, 1.442695
    %v603 = vpow.pop %v602
    %v604 = vsel %vm392, %v603, 0.0
    %605 = vadd.xlane.f32.xlu0 %v604
    %v606 = vpop.xlane.xlu0 %605
    %v607 = vrcp.pop %v606
    %v608 = vpack.c.bf16 %v603, %v603
    %609 = vrot.lane.b32.xlu0 %v424, 104
    %v610 = vpop.permute.xlu0 %609
    %v612 = vsel %vm392, %v608, 0
    %v615 = vsel %vm428, %v610, 0
    %617 = vmatpush.bf16.msra.mxu0 0
    %618 = vmatpush.bf16.msra.mxu0 0
    %619 = vmatpush.bf16.msra.mxu0 0
    %620 = vmatpush.bf16.msra.mxu0 0
    %621 = vmatpush.bf16.msra.mxu0 0
    %622 = vmatpush.bf16.msra.mxu0 0
    %623 = vmatpush.bf16.msra.mxu0 0
    %624 = vmatpush.bf16.msra.mxu0 %v615
    %625 = vmatmul.bf16.gmra.mxu0 %v612
    %v626 = vpop.f32.mrf.mxu0
    %v627 = vadd.f32 0.0, %v626
    %v628 = vpop.f32.mrf.mxu0
    %629 = vdwg.mxu0
    %v630 = vmul.f32 %v627, %v607
    %632 = vrot.lane.b32.xlu0 %v630, 24
    %v633 = vpop.permute.xlu0 %632
    %vm635 = vcmask 261312
    %636 = vst.msk [vmem:[#allocation2] sm:$0xff] %vm635, %v633
    %v637 = vld [vmem:[#allocation2] sm:$0xff]
    %v638 = vld [vmem:[#allocation19] sm:$0xf]
    %v639 = vld [vmem:[#allocation19 + $0x4] sm:$0xf]
    %v640 = vld [vmem:[#allocation19 + $0x8] sm:$0xf]
    %v641 = vld [vmem:[#allocation19 + $0xc] sm:$0xf]
    %v642 = vpack.c.bf16 %v637, %v637
    %v643 = vld [vmem:[%s19] sm:$0x1]
    %v645 = vperm.slane %v643, 0
    %v651 = vunpack.c.l.b16 %v638
    %v652 = vunpack.c.l.b16 %v639
    %v653 = vunpack.c.l.b16 %v640
    %v654 = vunpack.c.l.b16 %v641
    %v655 = vpack.c.b16 %v652, %v651
    %v656 = vpack.c.b16 %v654, %v653
    %v660 = vsel %vm334, %v642, 0
    %662 = vmatpush.bf16.msra.mxu0 0
    %663 = vmatpush.bf16.msra.mxu0 0
    %664 = vmatpush.bf16.msra.mxu0 0
    %665 = vmatpush.bf16.msra.mxu0 0
    %666 = vmatpush.bf16.msra.mxu0 0
    %667 = vmatpush.bf16.msra.mxu0 0
    %668 = vmatpush.bf16.msra.mxu0 %v656
    %669 = vmatpush.bf16.msra.mxu0 %v655
    %670 = vmatmul.bf16.gmra.mxu0 %v660
    %v671 = vpop.f32.mrf.mxu0
    %v672 = vadd.f32 %v645, %v671
    %v673 = vpop.f32.mrf.mxu0
    %674 = vdwg.mxu0
    %675 = vst.msk [vmem:[#allocation3] sm:$0xff] %vm334, %v672
    %s676 = scalar_lea.vmem [#allocation10], 1
    %v677 = vld [vmem:[%s676] ss:$2 sm:$0xff]
    %s678 = scalar_lea.vmem [#allocation13], 1
    %v679 = vld [vmem:[%s678] ss:$2 sm:$0xff]
    %v680 = vadd.f32 %v677, %v679
    %v681 = vld [vmem:[%s9] sm:$0xf]
    %v682 = vld [vmem:[%s9 + $0x4] sm:$0xf]
    %v683 = vld [vmem:[%s9 + $0x8] sm:$0xf]
    %v684 = vld [vmem:[%s9 + $0xc] sm:$0xf]
    %v685 = vpack.c.bf16 %v680, %v680
    %v686 = vld [vmem:[%s11] sm:$0x1]
    %v688 = vperm.slane %v686, 0
    %v694 = vunpack.c.l.b16 %v681
    %v695 = vunpack.c.l.b16 %v682
    %v696 = vunpack.c.l.b16 %v683
    %v697 = vunpack.c.l.b16 %v684
    %v698 = vpack.c.b16 %v695, %v694
    %v699 = vpack.c.b16 %v697, %v696
    %v703 = vsel %vm334, %v685, 0
    %705 = vmatpush.bf16.msra.mxu0 0
    %706 = vmatpush.bf16.msra.mxu0 0
    %707 = vmatpush.bf16.msra.mxu0 0
    %708 = vmatpush.bf16.msra.mxu0 0
    %709 = vmatpush.bf16.msra.mxu0 0
    %710 = vmatpush.bf16.msra.mxu0 0
    %711 = vmatpush.bf16.msra.mxu0 %v699
    %712 = vmatpush.bf16.msra.mxu0 %v698
    %713 = vmatmul.bf16.gmra.mxu0 %v703
    %v714 = vpop.f32.mrf.mxu0
    %v715 = vadd.f32 %v688, %v714
    %v716 = vpop.f32.mrf.mxu0
    %717 = vdwg.mxu0
    %v718 = vld [vmem:[#allocation18] sm:$0xf]
    %v719 = vld [vmem:[#allocation18 + $0x4] sm:$0xf]
    %v720 = vld [vmem:[#allocation18 + $0x8] sm:$0xf]
    %v721 = vld [vmem:[#allocation18 + $0xc] sm:$0xf]
    %v722 = vpack.c.bf16 %v677, %v677
    %v723 = vld [vmem:[%s15] sm:$0x1]
    %v725 = vperm.slane %v723, 0
    %v731 = vunpack.c.l.b16 %v718
    %v732 = vunpack.c.l.b16 %v719
    %v733 = vunpack.c.l.b16 %v720
    %v734 = vunpack.c.l.b16 %v721
    %v735 = vpack.c.b16 %v732, %v731
    %v736 = vpack.c.b16 %v734, %v733
    %v740 = vsel %vm334, %v722, 0
    %742 = vmatpush.bf16.msra.mxu0 0
    %743 = vmatpush.bf16.msra.mxu0 0
    %744 = vmatpush.bf16.msra.mxu0 0
    %745 = vmatpush.bf16.msra.mxu0 0
    %746 = vmatpush.bf16.msra.mxu0 0
    %747 = vmatpush.bf16.msra.mxu0 0
    %748 = vmatpush.bf16.msra.mxu0 %v736
    %749 = vmatpush.bf16.msra.mxu0 %v735
    %750 = vmatmul.bf16.gmra.mxu0 %v740
    %v751 = vpop.f32.mrf.mxu0
    %v752 = vadd.f32 %v725, %v751
    %v753 = vpop.f32.mrf.mxu0
    %754 = vdwg.mxu0
    %v755 = vpack.c.bf16 %v715, %v715
    %757 = vrot.lane.b32.xlu0 %v755, 96
    %v758 = vpop.permute.xlu0 %757
    %v760 = vsel %vm392, %v755, 0
    %v763 = vsel %vm392, %v758, 0
    %765 = vmatpush.bf16.xpose.msra.mxu0 0
    %766 = vmatpush.bf16.xpose.msra.mxu0 0
    %767 = vmatpush.bf16.xpose.msra.mxu0 0
    %768 = vmatpush.bf16.xpose.msra.mxu0 0
    %769 = vmatpush.bf16.xpose.msra.mxu0 0
    %770 = vmatpush.bf16.xpose.msra.mxu0 0
    %771 = vmatpush.bf16.xpose.msra.mxu0 0
    %772 = vmatpush.bf16.xpose.msra.mxu0 %v763
    %773 = vmatmul.bf16.gmra.mxu0 %v760
    %v774 = vpop.f32.mrf.mxu0
    %v775 = vadd.f32 0.0, %v774
    %v776 = vpop.f32.mrf.mxu0
    %777 = vdwg.mxu0
    %v778 = vmul.f32 %v775, 0.35355338
    %v779 = vsel %vm392, %v778, -inf
    %780 = vmax.xlane.f32.xlu0 %v779
    %v781 = vpop.xlane.xlu0 %780
    %v782 = vsub.f32 %v778, %v781
    %v783 = vmul.f32 %v782, 1.442695
    %v784 = vpow.pop %v783
    %v785 = vsel %vm392, %v784, 0.0
    %786 = vadd.xlane.f32.xlu0 %v785
    %v787 = vpop.xlane.xlu0 %786
    %v788 = vrcp.pop %v787
    %v789 = vpack.c.bf16 %v784, %v784
    %v790 = vpack.c.bf16 %v752, %v752
    %v792 = vsel %vm392, %v789, 0
    %v795 = vsel %vm428, %v790, 0
    %797 = vmatpush.bf16.msra.mxu0 0
    %798 = vmatpush.bf16.msra.mxu0 0
    %799 = vmatpush.bf16.msra.mxu0 0
    %800 = vmatpush.bf16.msra.mxu0 0
    %801 = vmatpush.bf16.msra.mxu0 0
    %802 = vmatpush.bf16.msra.mxu0 0
    %803 = vmatpush.bf16.msra.mxu0 0
    %804 = vmatpush.bf16.msra.mxu0 %v795
    %805 = vmatmul.bf16.gmra.mxu0 %v792
    %v806 = vpop.f32.mrf.mxu0
    %v807 = vadd.f32 0.0, %v806
    %v808 = vpop.f32.mrf.mxu0
    %809 = vdwg.mxu0
    %v810 = vmul.f32 %v807, %v788
    %811 = vst.msk [vmem:[#allocation2] sm:$0xff] %vm392, %v810
    %812 = vrot.lane.b32.xlu0 %v755, 120
    %v813 = vpop.permute.xlu0 %812
    %814 = vrot.lane.b32.xlu0 %v755, 88
    %v815 = vpop.permute.xlu0 %814
    %v817 = vsel %vm392, %v813, 0
    %v820 = vsel %vm392, %v815, 0
    %822 = vmatpush.bf16.xpose.msra.mxu0 0
    %823 = vmatpush.bf16.xpose.msra.mxu0 0
    %824 = vmatpush.bf16.xpose.msra.mxu0 0
    %825 = vmatpush.bf16.xpose.msra.mxu0 0
    %826 = vmatpush.bf16.xpose.msra.mxu0 0
    %827 = vmatpush.bf16.xpose.msra.mxu0 0
    %828 = vmatpush.bf16.xpose.msra.mxu0 0
    %829 = vmatpush.bf16.xpose.msra.mxu0 %v820
    %830 = vmatmul.bf16.gmra.mxu0 %v817
    %v831 = vpop.f32.mrf.mxu0
    %v832 = vadd.f32 0.0, %v831
    %v833 = vpop.f32.mrf.mxu0
    %834 = vdwg.mxu0
    %v835 = vmul.f32 %v832, 0.35355338
    %v836 = vsel %vm392, %v835, -inf
    %837 = vmax.xlane.f32.xlu0 %v836
    %v838 = vpop.xlane.xlu0 %837
    %v839 = vsub.f32 %v835, %v838
    %v840 = vmul.f32 %v839, 1.442695
    %v841 = vpow.pop %v840
    %v842 = vsel %vm392, %v841, 0.0
    %843 = vadd.xlane.f32.xlu0 %v842
    %v844 = vpop.xlane.xlu0 %843
    %v845 = vrcp.pop %v844
    %v846 = vpack.c.bf16 %v841, %v841
    %848 = vrot.lane.b32.xlu0 %v790, 120
    %v849 = vpop.permute.xlu0 %848
    %v851 = vsel %vm392, %v846, 0
    %v854 = vsel %vm428, %v849, 0
    %856 = vmatpush.bf16.msra.mxu0 0
    %857 = vmatpush.bf16.msra.mxu0 0
    %858 = vmatpush.bf16.msra.mxu0 0
    %859 = vmatpush.bf16.msra.mxu0 0
    %860 = vmatpush.bf16.msra.mxu0 0
    %861 = vmatpush.bf16.msra.mxu0 0
    %862 = vmatpush.bf16.msra.mxu0 0
    %863 = vmatpush.bf16.msra.mxu0 %v854
    %864 = vmatmul.bf16.gmra.mxu0 %v851
    %v865 = vpop.f32.mrf.mxu0
    %v866 = vadd.f32 0.0, %v865
    %v867 = vpop.f32.mrf.mxu0
    %868 = vdwg.mxu0
    %v869 = vmul.f32 %v866, %v845
    %871 = vrot.lane.b32.xlu0 %v869, 8
    %v872 = vpop.permute.xlu0 %871
    %874 = vst.msk [vmem:[#allocation2] sm:$0xff] %vm509, %v872
    %875 = vrot.lane.b32.xlu0 %v755, 112
    %v876 = vpop.permute.xlu0 %875
    %877 = vrot.lane.b32.xlu0 %v755, 80
    %v878 = vpop.permute.xlu0 %877
    %v880 = vsel %vm392, %v876, 0
    %v883 = vsel %vm392, %v878, 0
    %885 = vmatpush.bf16.xpose.msra.mxu0 0
    %886 = vmatpush.bf16.xpose.msra.mxu0 0
    %887 = vmatpush.bf16.xpose.msra.mxu0 0
    %888 = vmatpush.bf16.xpose.msra.mxu0 0
    %889 = vmatpush.bf16.xpose.msra.mxu0 0
    %890 = vmatpush.bf16.xpose.msra.mxu0 0
    %891 = vmatpush.bf16.xpose.msra.mxu0 0
    %892 = vmatpush.bf16.xpose.msra.mxu0 %v883
    %893 = vmatmul.bf16.gmra.mxu0 %v880
    %v894 = vpop.f32.mrf.mxu0
    %v895 = vadd.f32 0.0, %v894
    %v896 = vpop.f32.mrf.mxu0
    %897 = vdwg.mxu0
    %v898 = vmul.f32 %v895, 0.35355338
    %v899 = vsel %vm392, %v898, -inf
    %900 = vmax.xlane.f32.xlu0 %v899
    %v901 = vpop.xlane.xlu0 %900
    %v902 = vsub.f32 %v898, %v901
    %v903 = vmul.f32 %v902, 1.442695
    %v904 = vpow.pop %v903
    %v905 = vsel %vm392, %v904, 0.0
    %906 = vadd.xlane.f32.xlu0 %v905
    %v907 = vpop.xlane.xlu0 %906
    %v908 = vrcp.pop %v907
    %v909 = vpack.c.bf16 %v904, %v904
    %910 = vrot.lane.b32.xlu0 %v790, 112
    %v911 = vpop.permute.xlu0 %910
    %v913 = vsel %vm392, %v909, 0
    %v916 = vsel %vm428, %v911, 0
    %918 = vmatpush.bf16.msra.mxu0 0
    %919 = vmatpush.bf16.msra.mxu0 0
    %920 = vmatpush.bf16.msra.mxu0 0
    %921 = vmatpush.bf16.msra.mxu0 0
    %922 = vmatpush.bf16.msra.mxu0 0
    %923 = vmatpush.bf16.msra.mxu0 0
    %924 = vmatpush.bf16.msra.mxu0 0
    %925 = vmatpush.bf16.msra.mxu0 %v916
    %926 = vmatmul.bf16.gmra.mxu0 %v913
    %v927 = vpop.f32.mrf.mxu0
    %v928 = vadd.f32 0.0, %v927
    %v929 = vpop.f32.mrf.mxu0
    %930 = vdwg.mxu0
    %v931 = vmul.f32 %v928, %v908
    %933 = vrot.lane.b32.xlu0 %v931, 16
    %v934 = vpop.permute.xlu0 %933
    %936 = vst.msk [vmem:[#allocation2] sm:$0xff] %vm572, %v934
    %937 = vrot.lane.b32.xlu0 %v755, 104
    %v938 = vpop.permute.xlu0 %937
    %939 = vrot.lane.b32.xlu0 %v755, 72
    %v940 = vpop.permute.xlu0 %939
    %v942 = vsel %vm392, %v938, 0
    %v945 = vsel %vm392, %v940, 0
    %947 = vmatpush.bf16.xpose.msra.mxu0 0
    %948 = vmatpush.bf16.xpose.msra.mxu0 0
    %949 = vmatpush.bf16.xpose.msra.mxu0 0
    %950 = vmatpush.bf16.xpose.msra.mxu0 0
    %951 = vmatpush.bf16.xpose.msra.mxu0 0
    %952 = vmatpush.bf16.xpose.msra.mxu0 0
    %953 = vmatpush.bf16.xpose.msra.mxu0 0
    %954 = vmatpush.bf16.xpose.msra.mxu0 %v945
    %955 = vmatmul.bf16.gmra.mxu0 %v942
    %v956 = vpop.f32.mrf.mxu0
    %v957 = vadd.f32 0.0, %v956
    %v958 = vpop.f32.mrf.mxu0
    %959 = vdwg.mxu0
    %v960 = vmul.f32 %v957, 0.35355338
    %v961 = vsel %vm392, %v960, -inf
    %962 = vmax.xlane.f32.xlu0 %v961
    %v963 = vpop.xlane.xlu0 %962
    %v964 = vsub.f32 %v960, %v963
    %v965 = vmul.f32 %v964, 1.442695
    %v966 = vpow.pop %v965
    %v967 = vsel %vm392, %v966, 0.0
    %968 = vadd.xlane.f32.xlu0 %v967
    %v969 = vpop.xlane.xlu0 %968
    %v970 = vrcp.pop %v969
    %v971 = vpack.c.bf16 %v966, %v966
    %972 = vrot.lane.b32.xlu0 %v790, 104
    %v973 = vpop.permute.xlu0 %972
    %v975 = vsel %vm392, %v971, 0
    %v978 = vsel %vm428, %v973, 0
    %980 = vmatpush.bf16.msra.mxu0 0
    %981 = vmatpush.bf16.msra.mxu0 0
    %982 = vmatpush.bf16.msra.mxu0 0
    %983 = vmatpush.bf16.msra.mxu0 0
    %984 = vmatpush.bf16.msra.mxu0 0
    %985 = vmatpush.bf16.msra.mxu0 0
    %986 = vmatpush.bf16.msra.mxu0 0
    %987 = vmatpush.bf16.msra.mxu0 %v978
    %988 = vmatmul.bf16.gmra.mxu0 %v975
    %v989 = vpop.f32.mrf.mxu0
    %v990 = vadd.f32 0.0, %v989
    %v991 = vpop.f32.mrf.mxu0
    %992 = vdwg.mxu0
    %v993 = vmul.f32 %v990, %v970
    %995 = vrot.lane.b32.xlu0 %v993, 24
    %v996 = vpop.permute.xlu0 %995
    %998 = vst.msk [vmem:[#allocation2] sm:$0xff] %vm635, %v996
    %v999 = vld [vmem:[#allocation2] sm:$0xff]
    %v1000 = vld [vmem:[#allocation19] sm:$0xf]
    %v1001 = vld [vmem:[#allocation19 + $0x4] sm:$0xf]
    %v1002 = vld [vmem:[#allocation19 + $0x8] sm:$0xf]
    %v1003 = vld [vmem:[#allocation19 + $0xc] sm:$0xf]
    %v1004 = vpack.c.bf16 %v999, %v999
    %v1005 = vld [vmem:[%s19] sm:$0x1]
    %v1007 = vperm.slane %v1005, 0
    %v1013 = vunpack.c.l.b16 %v1000
    %v1014 = vunpack.c.l.b16 %v1001
    %v1015 = vunpack.c.l.b16 %v1002
    %v1016 = vunpack.c.l.b16 %v1003
    %v1017 = vpack.c.b16 %v1014, %v1013
    %v1018 = vpack.c.b16 %v1016, %v1015
    %v1022 = vsel %vm334, %v1004, 0
    %1024 = vmatpush.bf16.msra.mxu0 0
    %1025 = vmatpush.bf16.msra.mxu0 0
    %1026 = vmatpush.bf16.msra.mxu0 0
    %1027 = vmatpush.bf16.msra.mxu0 0
    %1028 = vmatpush.bf16.msra.mxu0 0
    %1029 = vmatpush.bf16.msra.mxu0 0
    %1030 = vmatpush.bf16.msra.mxu0 %v1018
    %1031 = vmatpush.bf16.msra.mxu0 %v1017
    %1032 = vmatmul.bf16.gmra.mxu0 %v1022
    %v1033 = vpop.f32.mrf.mxu0
    %v1034 = vadd.f32 %v1007, %v1033
    %v1035 = vpop.f32.mrf.mxu0
    %1036 = vdwg.mxu0
    %1037 = vst.msk [vmem:[#allocation3 + $0x8] sm:$0xff] %vm334, %v1034
    %v1038 = vld [vmem:[#allocation3] ss:$8 sm:$0x3]
    %vm1039 = vcmask 254976
    %1040 = vst.msk [vmem:[#allocation4] sm:$0x3] %vm1039, %v1038
    %s1041 = scalar_lea.vmem [#allocation3], 1
    %v1042 = vld [vmem:[%s1041] ss:$8 sm:$0x3]
    %1043 = vst.msk [vmem:[#allocation4 + $0x2] sm:$0x3] %vm1039, %v1042
    %s1044 = scalar_lea.vmem [#allocation3], 2
    %v1045 = vld [vmem:[%s1044] ss:$8 sm:$0x3]
    %1046 = vst.msk [vmem:[#allocation4 + $0x4] sm:$0x3] %vm1039, %v1045
    %s1047 = scalar_lea.vmem [#allocation3], 3
    %v1048 = vld [vmem:[%s1047] ss:$8 sm:$0x3]
    %1049 = vst.msk [vmem:[#allocation4 + $0x6] sm:$0x3] %vm1039, %v1048
    %s1050 = scalar_lea.vmem [#allocation3], 4
    %v1051 = vld [vmem:[%s1050] ss:$8 sm:$0x3]
    %1052 = vst.msk [vmem:[#allocation4 + $0x8] sm:$0x3] %vm1039, %v1051
    %s1053 = scalar_lea.vmem [#allocation3], 5
    %v1054 = vld [vmem:[%s1053] ss:$8 sm:$0x3]
    %1055 = vst.msk [vmem:[#allocation4 + $0xa] sm:$0x3] %vm1039, %v1054
    %s1056 = scalar_lea.vmem [#allocation3], 6
    %v1057 = vld [vmem:[%s1056] ss:$8 sm:$0x3]
    %1058 = vst.msk [vmem:[#allocation4 + $0xc] sm:$0x3] %vm1039, %v1057
    %s1059 = scalar_lea.vmem [#allocation3], 7
    %v1060 = vld [vmem:[%s1059] ss:$8 sm:$0x3]
    %1061 = vst.msk [vmem:[#allocation4 + $0xe] sm:$0x3] %vm1039, %v1060
    %v1062 = vld [vmem:[#allocation10] sm:$0xff]
    %v1063 = vld [vmem:[#allocation10 + $0x8] sm:$0xff]
    %v1064 = vld [vmem:[#allocation4] sm:$0xff]
    %v1065 = vld [vmem:[#allocation4 + $0x8] sm:$0xff]
    %v1066 = vadd.f32 %v1062, %v1064
    %v1067 = vadd.f32 %v1063, %v1065
    %v1068 = vld [vmem:[%s37] sm:$0x1]
    %v1069 = vld [vmem:[%s39] sm:$0x1]
    %v1070 = vsel %vm334, %v1066, 0.0
    %1071 = vadd.xlane.f32.xlu0 %v1070
    %v1072 = vpop.xlane.xlu0 %1071
    %v1073 = vsel %vm334, %v1067, 0.0
    %1074 = vadd.xlane.f32.xlu0 %v1073
    %v1075 = vpop.xlane.xlu0 %1074
    %v1076 = vrcp.pop 32.0
    %v1077 = vmul.f32 32.0, %v1076
    %v1078 = vsub.f32 1.0, %v1077
    %v1079 = vmul.f32 %v1076, %v1078
    %v1080 = vadd.f32 %v1076, %v1079
    %vm1081 = vweird.f32 %v1076
    %v1082 = vsel %vm1081, %v1076, %v1080
    %v1083 = vmul.f32 %v1072, %v1082
    %v1084 = vmul.f32 %v1075, %v1082
    %v1085 = vsub.f32 %v1066, %v1083
    %v1086 = vsub.f32 %v1067, %v1084
    %v1087 = vmul.f32 %v1085, %v1085
    %v1088 = vmul.f32 %v1086, %v1086
    %v1089 = vsel %vm334, %v1087, 0.0
    %1090 = vadd.xlane.f32.xlu0 %v1089
    %v1091 = vpop.xlane.xlu0 %1090
    %v1092 = vsel %vm334, %v1088, 0.0
    %1093 = vadd.xlane.f32.xlu0 %v1092
    %v1094 = vpop.xlane.xlu0 %1093
    %v1095 = vmul.f32 %v1091, %v1082
    %v1096 = vmul.f32 %v1094, %v1082
    %v1097 = vadd.f32 %v1095, 1e-05
    %v1098 = vadd.f32 %v1096, 1e-05
    %v1099 = vrsqrt.pop %v1097
    %v1100 = vmul.f32 %v1099, %v1097
    %v1101 = vmul.f32 %v1100, %v1099
    %v1102 = vmul.f32 0.5, %v1101
    %v1103 = vsub.f32 1.5, %v1102
    %v1104 = vmul.f32 %v1099, %v1103
    %vm1105 = vweird.f32 %v1097
    %vm1106 = vweird.f32 %v1099
    %vm1107 = vmor %vm1105, %vm1106
    %v1108 = vsel %vm1107, %v1099, %v1104
    %v1109 = vrsqrt.pop %v1098
    %v1110 = vmul.f32 %v1109, %v1098
    %v1111 = vmul.f32 %v1110, %v1109
    %v1112 = vmul.f32 0.5, %v1111
    %v1113 = vsub.f32 1.5, %v1112
    %v1114 = vmul.f32 %v1109, %v1113
    %vm1115 = vweird.f32 %v1098
    %vm1116 = vweird.f32 %v1109
    %vm1117 = vmor %vm1115, %vm1116
    %v1118 = vsel %vm1117, %v1109, %v1114
    %v1119 = vmul.f32 %v1085, %v1108
    %v1120 = vmul.f32 %v1086, %v1118
    %v1122 = vperm.slane %v1068, 0
    %v1124 = vmul.f32 %v1119, %v1122
    %v1125 = vmul.f32 %v1120, %v1122
    %v1127 = vperm.slane %v1069, 0
    %v1129 = vadd.f32 %v1124, %v1127
    %v1130 = vadd.f32 %v1125, %v1127
    %v1131 = vld [vmem:[#allocation13] sm:$0xff]
    %v1132 = vld [vmem:[#allocation13 + $0x8] sm:$0xff]
    %v1133 = vadd.f32 %v1129, %v1131
    %v1134 = vadd.f32 %v1130, %v1132
    %v1135 = vld [vmem:[#allocation21] sm:$0xf]
    %v1136 = vld [vmem:[#allocation21 + $0x4] sm:$0xf]
    %v1137 = vld [vmem:[#allocation21 + $0x8] sm:$0xf]
    %v1138 = vld [vmem:[#allocation21 + $0xc] sm:$0xf]
    %v1139 = vpack.c.bf16 %v1134, %v1133
    %v1140 = vld [vmem:[%s23] sm:$0x1]
    %v1142 = vperm.slane %v1140, 0
    %v1148 = vunpack.c.l.b16 %v1135
    %v1149 = vunpack.c.l.b16 %v1136
    %v1150 = vunpack.c.l.b16 %v1137
    %v1151 = vunpack.c.l.b16 %v1138
    %v1152 = vpack.c.b16 %v1149, %v1148
    %v1153 = vpack.c.b16 %v1151, %v1150
    %v1157 = vsel %vm334, %v1139, 0
    %1159 = vmatpush.bf16.msra.mxu0 0
    %1160 = vmatpush.bf16.msra.mxu0 0
    %1161 = vmatpush.bf16.msra.mxu0 0
    %1162 = vmatpush.bf16.msra.mxu0 0
    %1163 = vmatpush.bf16.msra.mxu0 0
    %1164 = vmatpush.bf16.msra.mxu0 0
    %1165 = vmatpush.bf16.msra.mxu0 %v1153
    %1166 = vmatpush.bf16.msra.mxu0 %v1152
    %1167 = vmatmul.bf16.gmra.mxu0 %v1157
    %v1168 = vpop.f32.mrf.mxu0
    %v1169 = vadd.f32 %v1142, %v1168
    %v1170 = vpop.f32.mrf.mxu0
    %v1171 = vadd.f32 %v1142, %v1170
    %1172 = vdwg.mxu0
    %1173 = vst.msk [vmem:[#allocation5] sm:$0xff] %vm334, %v1169
    %1174 = vst.msk [vmem:[#allocation5 + $0x8] sm:$0xff] %vm334, %v1171
    %v1175 = vld [vmem:[#allocation15] sm:$0xff]
    %v1176 = vld [vmem:[#allocation15 + $0x8] sm:$0xff]
    %v1177 = vld [vmem:[#allocation16] sm:$0xff]
    %v1178 = vld [vmem:[#allocation16 + $0x8] sm:$0xff]
    %v1179 = vadd.f32 %v1175, %v1177
    %v1180 = vadd.f32 %v1176, %v1178
    %v1181 = vld [vmem:[#allocation22] sm:$0xf]
    %v1182 = vld [vmem:[#allocation22 + $0x4] sm:$0xf]
    %v1183 = vld [vmem:[#allocation22 + $0x8] sm:$0xf]
    %v1184 = vld [vmem:[#allocation22 + $0xc] sm:$0xf]
    %v1185 = vpack.c.bf16 %v1180, %v1179
    %v1186 = vld [vmem:[%s27] sm:$0x1]
    %v1188 = vperm.slane %v1186, 0
    %v1194 = vunpack.c.l.b16 %v1181
    %v1195 = vunpack.c.l.b16 %v1182
    %v1196 = vunpack.c.l.b16 %v1183
    %v1197 = vunpack.c.l.b16 %v1184
    %v1198 = vpack.c.b16 %v1195, %v1194
    %v1199 = vpack.c.b16 %v1197, %v1196
    %v1203 = vsel %vm334, %v1185, 0
    %1205 = vmatpush.bf16.msra.mxu0 0
    %1206 = vmatpush.bf16.msra.mxu0 0
    %1207 = vmatpush.bf16.msra.mxu0 0
    %1208 = vmatpush.bf16.msra.mxu0 0
    %1209 = vmatpush.bf16.msra.mxu0 0
    %1210 = vmatpush.bf16.msra.mxu0 0
    %1211 = vmatpush.bf16.msra.mxu0 %v1199
    %1212 = vmatpush.bf16.msra.mxu0 %v1198
    %1213 = vmatmul.bf16.gmra.mxu0 %v1203
    %v1214 = vpop.f32.mrf.mxu0
    %v1215 = vadd.f32 %v1188, %v1214
    %v1216 = vpop.f32.mrf.mxu0
    %v1217 = vadd.f32 %v1188, %v1216
    %1218 = vdwg.mxu0
    %1219 = vst.msk [vmem:[#allocation6] sm:$0xff] %vm334, %v1215
    %1220 = vst.msk [vmem:[#allocation6 + $0x8] sm:$0xff] %vm334, %v1217
    %v1221 = vld [vmem:[#allocation15] sm:$0xff]
    %v1222 = vld [vmem:[#allocation15 + $0x8] sm:$0xff]
    %v1223 = vld [vmem:[#allocation24] sm:$0xf]
    %v1224 = vld [vmem:[#allocation24 + $0x4] sm:$0xf]
    %v1225 = vld [vmem:[#allocation24 + $0x8] sm:$0xf]
    %v1226 = vld [vmem:[#allocation24 + $0xc] sm:$0xf]
    %v1227 = vpack.c.bf16 %v1222, %v1221
    %v1228 = vld [vmem:[%s31] sm:$0x1]
    %v1230 = vperm.slane %v1228, 0
    %v1236 = vunpack.c.l.b16 %v1223
    %v1237 = vunpack.c.l.b16 %v1224
    %v1238 = vunpack.c.l.b16 %v1225
    %v1239 = vunpack.c.l.b16 %v1226
    %v1240 = vpack.c.b16 %v1237, %v1236
    %v1241 = vpack.c.b16 %v1239, %v1238
    %v1245 = vsel %vm334, %v1227, 0
    %1247 = vmatpush.bf16.msra.mxu0 0
    %1248 = vmatpush.bf16.msra.mxu0 0
    %1249 = vmatpush.bf16.msra.mxu0 0
    %1250 = vmatpush.bf16.msra.mxu0 0
    %1251 = vmatpush.bf16.msra.mxu0 0
    %1252 = vmatpush.bf16.msra.mxu0 0
    %1253 = vmatpush.bf16.msra.mxu0 %v1241
    %1254 = vmatpush.bf16.msra.mxu0 %v1240
    %1255 = vmatmul.bf16.gmra.mxu0 %v1245
    %v1256 = vpop.f32.mrf.mxu0
    %v1257 = vadd.f32 %v1230, %v1256
    %v1258 = vpop.f32.mrf.mxu0
    %v1259 = vadd.f32 %v1230, %v1258
    %1260 = vdwg.mxu0
    %1261 = vst.msk [vmem:[#allocation7] sm:$0xff] %vm334, %v1257
    %1262 = vst.msk [vmem:[#allocation7 + $0x8] sm:$0xff] %vm334, %v1259
    loop: start=0, step=1, limit=8
    $region162: #{_lambda_.1} parent=1 // loop_pre_header
      _
    $region163: #{_lambda_.1} parent=1 // loop_header
      %s1264 = sphi 0, %s1268
      %p1265 = scmp.ge.s32.totalorder %s1264, 8
    $region164: #{_lambda_.1} parent=1 // loop_header_branch
      %1267 = sbr.rel (%p1265) target = $region168
    $region165: #{_lambda_.1} parent=1 // loop_body
      %s1269 = smul.u32 %s1264, 2
      %s1270 = scalar_lea.vmem [#allocation5], %s1269
      %v1271 = vld [vmem:[%s1270] sm:$0x3]
      %s1272 = scalar_lea.vmem [#allocation6], %s1269
      %v1273 = vld [vmem:[%s1272] sm:$0x3]
      %s1274 = scalar_lea.vmem [#allocation7], %s1269
      %v1275 = vld [vmem:[%s1274] sm:$0x3]
      %v1276 = vpack.c.bf16 %v1271, %v1271
      %v1277 = vpack.c.bf16 %v1273, %v1273
      %v1279 = vsel %vm392, %v1276, 0
      %v1282 = vsel %vm392, %v1277, 0
      %1284 = vmatpush.bf16.xpose.msra.mxu0 0
      %1285 = vmatpush.bf16.xpose.msra.mxu0 0
      %1286 = vmatpush.bf16.xpose.msra.mxu0 0
      %1287 = vmatpush.bf16.xpose.msra.mxu0 0
      %1288 = vmatpush.bf16.xpose.msra.mxu0 0
      %1289 = vmatpush.bf16.xpose.msra.mxu0 0
      %1290 = vmatpush.bf16.xpose.msra.mxu0 0
      %1291 = vmatpush.bf16.xpose.msra.mxu0 %v1282
      %1292 = vmatmul.bf16.gmra.mxu0 %v1279
      %v1293 = vpop.f32.mrf.mxu0
      %v1294 = vadd.f32 0.0, %v1293
      %v1295 = vpop.f32.mrf.mxu0
      %1296 = vdwg.mxu0
      %v1297 = vmul.f32 %v1294, 0.35355338
      %vm1298 = vcmask 9216
      %v1299 = vsel %vm1298, %v1297, -inf
      %1300 = vmax.xlane.f32.xlu0 %v1299
      %v1301 = vpop.xlane.xlu0 %1300
      %v1302 = vsub.f32 %v1297, %v1301
      %v1303 = vmul.f32 %v1302, 1.442695
      %v1304 = vpow.pop %v1303
      %v1305 = vsel %vm1298, %v1304, 0.0
      %1306 = vadd.xlane.f32.xlu0 %v1305
      %v1307 = vpop.xlane.xlu0 %1306
      %v1308 = vrcp.pop %v1307
      %v1309 = vmul.f32 %v1307, %v1308
      %v1310 = vsub.f32 1.0, %v1309
      %v1311 = vmul.f32 %v1308, %v1310
      %v1312 = vadd.f32 %v1308, %v1311
      %vm1313 = vweird.f32 %v1307
      %vm1314 = vweird.f32 %v1308
      %vm1315 = vmor %vm1313, %vm1314
      %v1316 = vsel %vm1315, %v1308, %v1312
      %v1317 = vand.u32 2147483647, %v1307
      %vm1318 = vcmp.eq.f32.partialorder %v1317, 8.507059e+37
      %v1319 = vand.u32 %v1307, 2147483648
      %v1320 = vor.u32 1.1754944e-38, %v1319
      %v1321 = vsel %vm1318, %v1320, %v1316
      %v1322 = vmul.f32 %v1304, %v1321
      %v1323 = vpack.c.bf16 %v1322, %v1322
      %v1324 = vpack.c.bf16 %v1275, %v1275
      %vm1325 = vcmask 15360
      %v1327 = vsel %vm1325, %v1323, 0
      %vm1329 = vcmask 1040384
      %v1331 = vsel %vm1329, %v1324, 0
      %1333 = vmatpush.bf16.msra.mxu0 0
      %1334 = vmatpush.bf16.msra.mxu0 0
      %1335 = vmatpush.bf16.msra.mxu0 0
      %1336 = vmatpush.bf16.msra.mxu0 0
      %1337 = vmatpush.bf16.msra.mxu0 0
      %1338 = vmatpush.bf16.msra.mxu0 0
      %1339 = vmatpush.bf16.msra.mxu0 0
      %1340 = vmatpush.bf16.msra.mxu0 %v1331
      %1341 = vmatmul.bf16.gmra.mxu0 %v1327
      %v1342 = vpop.f32.mrf.mxu0
      %v1343 = vadd.f32 0.0, %v1342
      %v1344 = vpop.f32.mrf.mxu0
      %1345 = vdwg.mxu0
      %vm1346 = vcmask 58368
      %1347 = vst.msk [vmem:[#allocation8] sm:$0x3] %vm1346, %v1343
      %v1348 = vadd.f32 %v1322, 0.0
      %1350 = vrot.lane.b32.xlu0 %v1276, 120
      %v1351 = vpop.permute.xlu0 %1350
      %1353 = vrot.lane.b32.xlu0 %v1277, 120
      %v1354 = vpop.permute.xlu0 %1353
      %v1356 = vsel %vm392, %v1351, 0
      %v1359 = vsel %vm392, %v1354, 0
      %1361 = vmatpush.bf16.xpose.msra.mxu0 0
      %1362 = vmatpush.bf16.xpose.msra.mxu0 0
      %1363 = vmatpush.bf16.xpose.msra.mxu0 0
      %1364 = vmatpush.bf16.xpose.msra.mxu0 0
      %1365 = vmatpush.bf16.xpose.msra.mxu0 0
      %1366 = vmatpush.bf16.xpose.msra.mxu0 0
      %1367 = vmatpush.bf16.xpose.msra.mxu0 0
      %1368 = vmatpush.bf16.xpose.msra.mxu0 %v1359
      %1369 = vmatmul.bf16.gmra.mxu0 %v1356
      %v1370 = vpop.f32.mrf.mxu0
      %v1371 = vadd.f32 0.0, %v1370
      %v1372 = vpop.f32.mrf.mxu0
      %1373 = vdwg.mxu0
      %v1374 = vmul.f32 %v1371, 0.35355338
      %v1375 = vsel %vm1298, %v1374, -inf
      %1376 = vmax.xlane.f32.xlu0 %v1375
      %v1377 = vpop.xlane.xlu0 %1376
      %v1378 = vsub.f32 %v1374, %v1377
      %v1379 = vmul.f32 %v1378, 1.442695
      %v1380 = vpow.pop %v1379
      %v1381 = vsel %vm1298, %v1380, 0.0
      %1382 = vadd.xlane.f32.xlu0 %v1381
      %v1383 = vpop.xlane.xlu0 %1382
      %v1384 = vrcp.pop %v1383
      %v1385 = vmul.f32 %v1383, %v1384
      %v1386 = vsub.f32 1.0, %v1385
      %v1387 = vmul.f32 %v1384, %v1386
      %v1388 = vadd.f32 %v1384, %v1387
      %vm1389 = vweird.f32 %v1383
      %vm1390 = vweird.f32 %v1384
      %vm1391 = vmor %vm1389, %vm1390
      %v1392 = vsel %vm1391, %v1384, %v1388
      %v1393 = vand.u32 2147483647, %v1383
      %vm1394 = vcmp.eq.f32.partialorder %v1393, 8.507059e+37
      %v1395 = vand.u32 %v1383, 2147483648
      %v1396 = vor.u32 1.1754944e-38, %v1395
      %v1397 = vsel %vm1394, %v1396, %v1392
      %v1398 = vmul.f32 %v1380, %v1397
      %v1399 = vpack.c.bf16 %v1398, %v1398
      %1401 = vrot.lane.b32.xlu0 %v1324, 120
      %v1402 = vpop.permute.xlu0 %1401
      %v1404 = vsel %vm1325, %v1399, 0
      %v1407 = vsel %vm1329, %v1402, 0
      %1409 = vmatpush.bf16.msra.mxu0 0
      %1410 = vmatpush.bf16.msra.mxu0 0
      %1411 = vmatpush.bf16.msra.mxu0 0
      %1412 = vmatpush.bf16.msra.mxu0 0
      %1413 = vmatpush.bf16.msra.mxu0 0
      %1414 = vmatpush.bf16.msra.mxu0 0
      %1415 = vmatpush.bf16.msra.mxu0 0
      %1416 = vmatpush.bf16.msra.mxu0 %v1407
      %1417 = vmatmul.bf16.gmra.mxu0 %v1404
      %v1418 = vpop.f32.mrf.mxu0
      %v1419 = vadd.f32 0.0, %v1418
      %v1420 = vpop.f32.mrf.mxu0
      %1421 = vdwg.mxu0
      %1423 = vrot.lane.b32.xlu0 %v1419, 8
      %v1424 = vpop.permute.xlu0 %1423
      %vm1426 = vcmask 123968
      %1427 = vst.msk [vmem:[#allocation8] sm:$0x3] %vm1426, %v1424
      %v1428 = vadd.f32 %v1348, %v1398
      %1429 = vrot.lane.b32.xlu0 %v1276, 112
      %v1430 = vpop.permute.xlu0 %1429
      %1431 = vrot.lane.b32.xlu0 %v1277, 112
      %v1432 = vpop.permute.xlu0 %1431
      %v1434 = vsel %vm392, %v1430, 0
      %v1437 = vsel %vm392, %v1432, 0
      %1439 = vmatpush.bf16.xpose.msra.mxu0 0
      %1440 = vmatpush.bf16.xpose.msra.mxu0 0
      %1441 = vmatpush.bf16.xpose.msra.mxu0 0
      %1442 = vmatpush.bf16.xpose.msra.mxu0 0
      %1443 = vmatpush.bf16.xpose.msra.mxu0 0
      %1444 = vmatpush.bf16.xpose.msra.mxu0 0
      %1445 = vmatpush.bf16.xpose.msra.mxu0 0
      %1446 = vmatpush.bf16.xpose.msra.mxu0 %v1437
      %1447 = vmatmul.bf16.gmra.mxu0 %v1434
      %v1448 = vpop.f32.mrf.mxu0
      %v1449 = vadd.f32 0.0, %v1448
      %v1450 = vpop.f32.mrf.mxu0
      %1451 = vdwg.mxu0
      %v1452 = vmul.f32 %v1449, 0.35355338
      %v1453 = vsel %vm1298, %v1452, -inf
      %1454 = vmax.xlane.f32.xlu0 %v1453
      %v1455 = vpop.xlane.xlu0 %1454
      %v1456 = vsub.f32 %v1452, %v1455
      %v1457 = vmul.f32 %v1456, 1.442695
      %v1458 = vpow.pop %v1457
      %v1459 = vsel %vm1298, %v1458, 0.0
      %1460 = vadd.xlane.f32.xlu0 %v1459
      %v1461 = vpop.xlane.xlu0 %1460
      %v1462 = vrcp.pop %v1461
      %v1463 = vmul.f32 %v1461, %v1462
      %v1464 = vsub.f32 1.0, %v1463
      %v1465 = vmul.f32 %v1462, %v1464
      %v1466 = vadd.f32 %v1462, %v1465
      %vm1467 = vweird.f32 %v1461
      %vm1468 = vweird.f32 %v1462
      %vm1469 = vmor %vm1467, %vm1468
      %v1470 = vsel %vm1469, %v1462, %v1466
      %v1471 = vand.u32 2147483647, %v1461
      %vm1472 = vcmp.eq.f32.partialorder %v1471, 8.507059e+37
      %v1473 = vand.u32 %v1461, 2147483648
      %v1474 = vor.u32 1.1754944e-38, %v1473
      %v1475 = vsel %vm1472, %v1474, %v1470
      %v1476 = vmul.f32 %v1458, %v1475
      %v1477 = vpack.c.bf16 %v1476, %v1476
      %1478 = vrot.lane.b32.xlu0 %v1324, 112
      %v1479 = vpop.permute.xlu0 %1478
      %v1481 = vsel %vm1325, %v1477, 0
      %v1484 = vsel %vm1329, %v1479, 0
      %1486 = vmatpush.bf16.msra.mxu0 0
      %1487 = vmatpush.bf16.msra.mxu0 0
      %1488 = vmatpush.bf16.msra.mxu0 0
      %1489 = vmatpush.bf16.msra.mxu0 0
      %1490 = vmatpush.bf16.msra.mxu0 0
      %1491 = vmatpush.bf16.msra.mxu0 0
      %1492 = vmatpush.bf16.msra.mxu0 0
      %1493 = vmatpush.bf16.msra.mxu0 %v1484
      %1494 = vmatmul.bf16.gmra.mxu0 %v1481
      %v1495 = vpop.f32.mrf.mxu0
      %v1496 = vadd.f32 0.0, %v1495
      %v1497 = vpop.f32.mrf.mxu0
      %1498 = vdwg.mxu0
      %1500 = vrot.lane.b32.xlu0 %v1496, 16
      %v1501 = vpop.permute.xlu0 %1500
      %vm1503 = vcmask 189568
      %1504 = vst.msk [vmem:[#allocation8] sm:$0x3] %vm1503, %v1501
      %v1505 = vadd.f32 %v1428, %v1476
      %1506 = vrot.lane.b32.xlu0 %v1276, 104
      %v1507 = vpop.permute.xlu0 %1506
      %1508 = vrot.lane.b32.xlu0 %v1277, 104
      %v1509 = vpop.permute.xlu0 %1508
      %v1511 = vsel %vm392, %v1507, 0
      %v1514 = vsel %vm392, %v1509, 0
      %1516 = vmatpush.bf16.xpose.msra.mxu0 0
      %1517 = vmatpush.bf16.xpose.msra.mxu0 0
      %1518 = vmatpush.bf16.xpose.msra.mxu0 0
      %1519 = vmatpush.bf16.xpose.msra.mxu0 0
      %1520 = vmatpush.bf16.xpose.msra.mxu0 0
      %1521 = vmatpush.bf16.xpose.msra.mxu0 0
      %1522 = vmatpush.bf16.xpose.msra.mxu0 0
      %1523 = vmatpush.bf16.xpose.msra.mxu0 %v1514
      %1524 = vmatmul.bf16.gmra.mxu0 %v1511
      %v1525 = vpop.f32.mrf.mxu0
      %v1526 = vadd.f32 0.0, %v1525
      %v1527 = vpop.f32.mrf.mxu0
      %1528 = vdwg.mxu0
      %v1529 = vmul.f32 %v1526, 0.35355338
      %v1530 = vsel %vm1298, %v1529, -inf
      %1531 = vmax.xlane.f32.xlu0 %v1530
      %v1532 = vpop.xlane.xlu0 %1531
      %v1533 = vsub.f32 %v1529, %v1532
      %v1534 = vmul.f32 %v1533, 1.442695
      %v1535 = vpow.pop %v1534
      %v1536 = vsel %vm1298, %v1535, 0.0
      %1537 = vadd.xlane.f32.xlu0 %v1536
      %v1538 = vpop.xlane.xlu0 %1537
      %v1539 = vrcp.pop %v1538
      %v1540 = vmul.f32 %v1538, %v1539
      %v1541 = vsub.f32 1.0, %v1540
      %v1542 = vmul.f32 %v1539, %v1541
      %v1543 = vadd.f32 %v1539, %v1542
      %vm1544 = vweird.f32 %v1538
      %vm1545 = vweird.f32 %v1539
      %vm1546 = vmor %vm1544, %vm1545
      %v1547 = vsel %vm1546, %v1539, %v1543
      %v1548 = vand.u32 2147483647, %v1538
      %vm1549 = vcmp.eq.f32.partialorder %v1548, 8.507059e+37
      %v1550 = vand.u32 %v1538, 2147483648
      %v1551 = vor.u32 1.1754944e-38, %v1550
      %v1552 = vsel %vm1549, %v1551, %v1547
      %v1553 = vmul.f32 %v1535, %v1552
      %v1554 = vpack.c.bf16 %v1553, %v1553
      %1555 = vrot.lane.b32.xlu0 %v1324, 104
      %v1556 = vpop.permute.xlu0 %1555
      %v1558 = vsel %vm1325, %v1554, 0
      %v1561 = vsel %vm1329, %v1556, 0
      %1563 = vmatpush.bf16.msra.mxu0 0
      %1564 = vmatpush.bf16.msra.mxu0 0
      %1565 = vmatpush.bf16.msra.mxu0 0
      %1566 = vmatpush.bf16.msra.mxu0 0
      %1567 = vmatpush.bf16.msra.mxu0 0
      %1568 = vmatpush.bf16.msra.mxu0 0
      %1569 = vmatpush.bf16.msra.mxu0 0
      %1570 = vmatpush.bf16.msra.mxu0 %v1561
      %1571 = vmatmul.bf16.gmra.mxu0 %v1558
      %v1572 = vpop.f32.mrf.mxu0
      %v1573 = vadd.f32 0.0, %v1572
      %v1574 = vpop.f32.mrf.mxu0
      %1575 = vdwg.mxu0
      %1577 = vrot.lane.b32.xlu0 %v1573, 24
      %v1578 = vpop.permute.xlu0 %1577
      %vm1580 = vcmask 255168
      %1581 = vst.msk [vmem:[#allocation8] sm:$0x3] %vm1580, %v1578
      %v1582 = vadd.f32 %v1505, %v1553
      %v1583 = vld [vmem:[#allocation8] sm:$0x3]
      %s1584 = scalar_lea.vmem [#allocation9], %s1269
      %1585 = vst.msk [vmem:[%s1584] sm:$0x3] %vm1039, %v1583
      %v1586 = vmul.f32 %v1582, 0.25
      %s1587 = scalar_lea.vmem %s59, %s1269
      %1588 = vst.msk [vmem:[%s1587] sm:$0x3] %vm1298, %v1586
    $region166: #{_lambda_.1} parent=1 // loop_footer
      %s1268 = sadd.s32 1, %s1264
    $region167: #{_lambda_.1} parent=1 // loop_footer_branch
      %1263 = sbr.rel target = $region163
    $region168: #{_lambda_.1} parent=1 // loop_exit
      _
    %v1589 = vld [vmem:[#allocation9] sm:$0xff]
    %v1590 = vld [vmem:[#allocation9 + $0x8] sm:$0xff]
    %v1591 = vld [vmem:[#allocation25] sm:$0xf]
    %v1592 = vld [vmem:[#allocation25 + $0x4] sm:$0xf]
    %v1593 = vld [vmem:[#allocation25 + $0x8] sm:$0xf]
    %v1594 = vld [vmem:[#allocation25 + $0xc] sm:$0xf]
    %v1595 = vpack.c.bf16 %v1590, %v1589
    %v1596 = vld [vmem:[%s35] sm:$0x1]
    %v1598 = vperm.slane %v1596, 0
    %v1604 = vunpack.c.l.b16 %v1591
    %v1605 = vunpack.c.l.b16 %v1592
    %v1606 = vunpack.c.l.b16 %v1593
    %v1607 = vunpack.c.l.b16 %v1594
    %v1608 = vpack.c.b16 %v1605, %v1604
    %v1609 = vpack.c.b16 %v1607, %v1606
    %v1613 = vsel %vm334, %v1595, 0
    %1615 = vmatpush.bf16.msra.mxu0 0
    %1616 = vmatpush.bf16.msra.mxu0 0
    %1617 = vmatpush.bf16.msra.mxu0 0
    %1618 = vmatpush.bf16.msra.mxu0 0
    %1619 = vmatpush.bf16.msra.mxu0 0
    %1620 = vmatpush.bf16.msra.mxu0 0
    %1621 = vmatpush.bf16.msra.mxu0 %v1609
    %1622 = vmatpush.bf16.msra.mxu0 %v1608
    %1623 = vmatmul.bf16.gmra.mxu0 %v1613
    %v1624 = vpop.f32.mrf.mxu0
    %v1625 = vadd.f32 %v1598, %v1624
    %v1626 = vpop.f32.mrf.mxu0
    %v1627 = vadd.f32 %v1598, %v1626
    %1628 = vdwg.mxu0
    %v1629 = vadd.f32 %v1129, %v1625
    %v1630 = vadd.f32 %v1130, %v1627
    %v1631 = vld [vmem:[%s41] sm:$0x1]
    %v1632 = vld [vmem:[%s43] sm:$0x1]
    %v1633 = vsel %vm334, %v1629, 0.0
    %1634 = vadd.xlane.f32.xlu0 %v1633
    %v1635 = vpop.xlane.xlu0 %1634
    %v1636 = vsel %vm334, %v1630, 0.0
    %1637 = vadd.xlane.f32.xlu0 %v1636
    %v1638 = vpop.xlane.xlu0 %1637
    %v1639 = vmul.f32 %v1635, %v1082
    %v1640 = vmul.f32 %v1638, %v1082
    %v1641 = vsub.f32 %v1629, %v1639
    %v1642 = vsub.f32 %v1630, %v1640
    %v1643 = vmul.f32 %v1641, %v1641
    %v1644 = vmul.f32 %v1642, %v1642
    %v1645 = vsel %vm334, %v1643, 0.0
    %1646 = vadd.xlane.f32.xlu0 %v1645
    %v1647 = vpop.xlane.xlu0 %1646
    %v1648 = vsel %vm334, %v1644, 0.0
    %1649 = vadd.xlane.f32.xlu0 %v1648
    %v1650 = vpop.xlane.xlu0 %1649
    %v1651 = vmul.f32 %v1647, %v1082
    %v1652 = vmul.f32 %v1650, %v1082
    %v1653 = vadd.f32 %v1651, 1e-05
    %v1654 = vadd.f32 %v1652, 1e-05
    %v1655 = vrsqrt.pop %v1653
    %v1656 = vmul.f32 %v1655, %v1653
    %v1657 = vmul.f32 %v1656, %v1655
    %v1658 = vmul.f32 0.5, %v1657
    %v1659 = vsub.f32 1.5, %v1658
    %v1660 = vmul.f32 %v1655, %v1659
    %vm1661 = vweird.f32 %v1653
    %vm1662 = vweird.f32 %v1655
    %vm1663 = vmor %vm1661, %vm1662
    %v1664 = vsel %vm1663, %v1655, %v1660
    %v1665 = vrsqrt.pop %v1654
    %v1666 = vmul.f32 %v1665, %v1654
    %v1667 = vmul.f32 %v1666, %v1665
    %v1668 = vmul.f32 0.5, %v1667
    %v1669 = vsub.f32 1.5, %v1668
    %v1670 = vmul.f32 %v1665, %v1669
    %vm1671 = vweird.f32 %v1654
    %vm1672 = vweird.f32 %v1665
    %vm1673 = vmor %vm1671, %vm1672
    %v1674 = vsel %vm1673, %v1665, %v1670
    %v1675 = vmul.f32 %v1641, %v1664
    %v1676 = vmul.f32 %v1642, %v1674
    %v1678 = vperm.slane %v1631, 0
    %v1680 = vmul.f32 %v1675, %v1678
    %v1681 = vmul.f32 %v1676, %v1678
    %v1683 = vperm.slane %v1632, 0
    %v1685 = vadd.f32 %v1680, %v1683
    %v1686 = vadd.f32 %v1681, %v1683
    %v1687 = vld [vmem:[#allocation27] sm:$0xf]
    %v1688 = vld [vmem:[#allocation27 + $0x4] sm:$0xf]
    %v1689 = vld [vmem:[#allocation27 + $0x8] sm:$0xf]
    %v1690 = vld [vmem:[#allocation27 + $0xc] sm:$0xf]
    %v1691 = vpack.c.bf16 %v1686, %v1685
    %v1692 = vld [vmem:[%s51] sm:$0x1]
    %v1694 = vperm.slane %v1692, 0
    %v1700 = vunpack.c.l.b16 %v1687
    %v1701 = vunpack.c.l.b16 %v1688
    %v1702 = vunpack.c.l.b16 %v1689
    %v1703 = vunpack.c.l.b16 %v1690
    %v1704 = vpack.c.b16 %v1701, %v1700
    %v1705 = vpack.c.b16 %v1703, %v1702
    %v1709 = vsel %vm334, %v1691, 0
    %1711 = vmatpush.bf16.msra.mxu0 0
    %1712 = vmatpush.bf16.msra.mxu0 0
    %1713 = vmatpush.bf16.msra.mxu0 0
    %1714 = vmatpush.bf16.msra.mxu0 0
    %1715 = vmatpush.bf16.msra.mxu0 0
    %1716 = vmatpush.bf16.msra.mxu0 0
    %1717 = vmatpush.bf16.msra.mxu0 %v1705
    %1718 = vmatpush.bf16.msra.mxu0 %v1704
    %1719 = vmatmul.bf16.gmra.mxu0 %v1709
    %v1720 = vpop.f32.mrf.mxu0
    %v1721 = vadd.f32 %v1694, %v1720
    %v1722 = vpop.f32.mrf.mxu0
    %v1723 = vadd.f32 %v1694, %v1722
    %1724 = vdwg.mxu0
    %v1725 = vmax.f32 %v1721, 0.0
    %v1726 = vmax.f32 %v1723, 0.0
    %v1727 = vld [vmem:[#allocation28] sm:$0xf]
    %v1728 = vld [vmem:[#allocation28 + $0x4] sm:$0xf]
    %v1729 = vld [vmem:[#allocation28 + $0x8] sm:$0xf]
    %v1730 = vld [vmem:[#allocation28 + $0xc] sm:$0xf]
    %v1731 = vld [vmem:[#allocation28 + $0x10] sm:$0xf]
    %v1732 = vld [vmem:[#allocation28 + $0x14] sm:$0xf]
    %v1733 = vld [vmem:[#allocation28 + $0x18] sm:$0xf]
    %v1734 = vld [vmem:[#allocation28 + $0x1c] sm:$0xf]
    %v1735 = vpack.c.bf16 %v1726, %v1725
    %v1736 = vld [vmem:[%s55] sm:$0x1]
    %v1738 = vperm.slane %v1736, 0
    %v1748 = vunpack.c.l.b16 %v1727
    %v1749 = vunpack.c.l.b16 %v1728
    %v1750 = vunpack.c.l.b16 %v1729
    %v1751 = vunpack.c.l.b16 %v1730
    %v1752 = vunpack.c.l.b16 %v1731
    %v1753 = vunpack.c.l.b16 %v1732
    %v1754 = vunpack.c.l.b16 %v1733
    %v1755 = vunpack.c.l.b16 %v1734
    %v1756 = vpack.c.b16 %v1749, %v1748
    %v1757 = vpack.c.b16 %v1751, %v1750
    %v1758 = vpack.c.b16 %v1753, %v1752
    %v1759 = vpack.c.b16 %v1755, %v1754
    %vm1764 = vcmask 523264
    %v1766 = vsel %vm1764, %v1735, 0
    %1768 = vmatpush.bf16.msra.mxu0 0
    %1769 = vmatpush.bf16.msra.mxu0 0
    %1770 = vmatpush.bf16.msra.mxu0 0
    %1771 = vmatpush.bf16.msra.mxu0 0
    %1772 = vmatpush.bf16.msra.mxu0 %v1759
    %1773 = vmatpush.bf16.msra.mxu0 %v1758
    %1774 = vmatpush.bf16.msra.mxu0 %v1757
    %1775 = vmatpush.bf16.msra.mxu0 %v1756
    %1776 = vmatmul.bf16.gmra.mxu0 %v1766
    %v1777 = vpop.f32.mrf.mxu0
    %v1778 = vadd.f32 %v1738, %v1777
    %v1779 = vpop.f32.mrf.mxu0
    %v1780 = vadd.f32 %v1738, %v1779
    %1781 = vdwg.mxu0
    %v1782 = vadd.f32 %v1685, %v1778
    %v1783 = vadd.f32 %v1686, %v1780
    %v1784 = vld [vmem:[%s45] sm:$0x1]
    %v1785 = vld [vmem:[%s47] sm:$0x1]
    %v1786 = vsel %vm334, %v1782, 0.0
    %1787 = vadd.xlane.f32.xlu0 %v1786
    %v1788 = vpop.xlane.xlu0 %1787
    %v1789 = vsel %vm334, %v1783, 0.0
    %1790 = vadd.xlane.f32.xlu0 %v1789
    %v1791 = vpop.xlane.xlu0 %1790
    %v1792 = vmul.f32 %v1788, %v1082
    %v1793 = vmul.f32 %v1791, %v1082
    %v1794 = vsub.f32 %v1782, %v1792
    %v1795 = vsub.f32 %v1783, %v1793
    %v1796 = vmul.f32 %v1794, %v1794
    %v1797 = vmul.f32 %v1795, %v1795
    %v1798 = vsel %vm334, %v1796, 0.0
    %1799 = vadd.xlane.f32.xlu0 %v1798
    %v1800 = vpop.xlane.xlu0 %1799
    %v1801 = vsel %vm334, %v1797, 0.0
    %1802 = vadd.xlane.f32.xlu0 %v1801
    %v1803 = vpop.xlane.xlu0 %1802
    %v1804 = vmul.f32 %v1800, %v1082
    %v1805 = vmul.f32 %v1803, %v1082
    %v1806 = vadd.f32 %v1804, 1e-05
    %v1807 = vadd.f32 %v1805, 1e-05
    %v1808 = vrsqrt.pop %v1806
    %v1809 = vmul.f32 %v1808, %v1806
    %v1810 = vmul.f32 %v1809, %v1808
    %v1811 = vmul.f32 0.5, %v1810
    %v1812 = vsub.f32 1.5, %v1811
    %v1813 = vmul.f32 %v1808, %v1812
    %vm1814 = vweird.f32 %v1806
    %vm1815 = vweird.f32 %v1808
    %vm1816 = vmor %vm1814, %vm1815
    %v1817 = vsel %vm1816, %v1808, %v1813
    %v1818 = vrsqrt.pop %v1807
    %v1819 = vmul.f32 %v1818, %v1807
    %v1820 = vmul.f32 %v1819, %v1818
    %v1821 = vmul.f32 0.5, %v1820
    %v1822 = vsub.f32 1.5, %v1821
    %v1823 = vmul.f32 %v1818, %v1822
    %vm1824 = vweird.f32 %v1807
    %vm1825 = vweird.f32 %v1818
    %vm1826 = vmor %vm1824, %vm1825
    %v1827 = vsel %vm1826, %v1818, %v1823
    %v1828 = vmul.f32 %v1794, %v1817
    %v1829 = vmul.f32 %v1795, %v1827
    %v1831 = vperm.slane %v1784, 0
    %v1833 = vmul.f32 %v1828, %v1831
    %v1834 = vmul.f32 %v1829, %v1831
    %v1836 = vperm.slane %v1785, 0
    %v1838 = vadd.f32 %v1833, %v1836
    %v1839 = vadd.f32 %v1834, %v1836
    %1840 = vst.msk [vmem:[#allocation30] sm:$0xff] %vm334, %v1838
    %1841 = vst.msk [vmem:[#allocation30 + $0x8] sm:$0xff] %vm334, %v1839
    // Predicated region
    $region169: #{_lambda_.1} parent=1 // pred_check
      _
    $region170: #{_lambda_.1} parent=1 // pred_check_branch
      %1843 = sbr.rel (0) target = $region172
    $region171: #{_lambda_.1} parent=1 // pred_region
      %1845 = vsyncadd [#allocation12], 0
      %s1846 = sshll.u32 [#allocation30], 4
      %s1847 = int_to_ptr.vmem [resolvable:$true] %s1846
      %s1848 = sshll.u32 %s57, 4
      %s1849 = int_to_ptr.hbm [resolvable:$true] %s1848
      %1854 = dma.vmem_to_hbm [thread:$0]  %s1847, 256, %s1849, [#allocation12], 128, 128, 8
    $region172: #{_lambda_.1} parent=1 // pred_fallthru
      _
    // Predicated region
    $region173: #{_lambda_.1} parent=1 // pred_check
      _
    $region174: #{_lambda_.1} parent=1 // pred_check_branch
      %1856 = sbr.rel (0) target = $region176
    $region175: #{_lambda_.1} parent=1 // pred_region
      _
    $region176: #{_lambda_.1} parent=1 // pred_fallthru
      _
    // Predicated region
    $region177: #{_lambda_.1} parent=1 // pred_check
      _
    $region178: #{_lambda_.1} parent=1 // pred_check_branch
      %1858 = sbr.rel (0) target = $region180
    $region179: #{_lambda_.1} parent=1 // pred_region
      %1860 = dma.done [#allocation12], 256
    $region180: #{_lambda_.1} parent=1 // pred_fallthru
      _
    // Predicated region
    $region181: #{_lambda_.1} parent=1 // pred_check
      _
    $region182: #{_lambda_.1} parent=1 // pred_check_branch
      %1862 = sbr.rel (0) target = $region184
    $region183: #{_lambda_.1} parent=1 // pred_region
      _
    $region184: #{_lambda_.1} parent=1 // pred_fallthru
      _
    %1863 = vsyncpa [#allocation11], 1
    %1864 = vsyncpa [#allocation14], 1
    %1865 = vsyncpa [#allocation17], 1
    %1866 = vsyncpa [#allocation20], 1
    %1867 = vsyncpa [#allocation23], 1
    %1868 = vsyncpa [#allocation26], 1
    %1869 = vsyncpa [#allocation29], 1
    %1870 = vsyncpa [#allocation12], 1

</llo_original>
